<compile_context>
chip_gen: v5e
topology: v5e:2x2
jax: 0.10.0
libtpu: 0.0.40
codegen_flags: <defaults>
</compile_context>

<pallas_src>
import functools
import math

import jax
import jax.numpy as jnp
from jax import lax
from jax.experimental import pallas as pl
from jax.experimental.pallas import tpu as pltpu

N_EMBD = 64
N_HEAD = 8
HEAD_SIZE = N_EMBD // N_HEAD           # 8
HIDDEN = 4 * N_EMBD                    # 256
BLOCK_SIZE = 128                       # max context (size of the tril buffer)
DROPOUT_P = 0.4
LN_EPS = 1e-5                          # torch.nn.LayerNorm default
KEEP_SCALE = 1.0 / (1.0 - DROPOUT_P)   # inverted-dropout scale
DROP_THRESH_24 = int(round(DROPOUT_P * (1 << 24)))   # integer-domain threshold
MASK_VALUE = -1e30                     # causal-mask fill (exp() underflows to 0)


# ---------------------------------------------------------------------------
# In-kernel helpers (pure jnp/lax -> lower on Mosaic and in interpret mode).
# ---------------------------------------------------------------------------

def _keep_mask(counter, seed):
    """Boolean keep-mask with P(keep) = 1 - DROPOUT_P from an int32 counter.

    Counter-based hash (SplitMix32-style finalizer) done in uint32 so all
    right-shifts are logical; the final compare is in non-negative int32.
    Deterministic, but intentionally not torch-RNG-compatible.
    """
    x = counter.astype(jnp.uint32) ^ jnp.uint32(seed)
    x = (x ^ (x >> 16)) * jnp.uint32(0x7FEB352D)
    x = (x ^ (x >> 15)) * jnp.uint32(0x846CA68B)
    x = x ^ (x >> 16)
    low24 = (x & jnp.uint32(0x00FFFFFF)).astype(jnp.int32)
    return low24 >= jnp.int32(DROP_THRESH_24)


def _layernorm(x, gamma, beta, inv_n):
    """LayerNorm over the last dim, single-pass (sum, sum-of-squares) f32 stats."""
    s1 = jnp.sum(x, axis=-1, keepdims=True)
    s2 = jnp.sum(x * x, axis=-1, keepdims=True)
    mean = s1 * inv_n
    var = jnp.maximum(s2 * inv_n - mean * mean, 0.0)
    return (x - mean) * lax.rsqrt(var + LN_EPS) * gamma + beta


# ---------------------------------------------------------------------------
# Fused Block kernel: ln1 -> QKV -> causal MHA -> proj -> +res -> ln2 -> FFN -> +res
# ---------------------------------------------------------------------------

def block_kernel(x_ref, ln1g_ref, ln1b_ref, wqkv_ref, wp_ref, bp_ref,
                 ln2g_ref, ln2b_ref, w1_ref, b1_ref, lnfg_ref, lnfb_ref,
                 w2_ref, b2_ref, o_ref,
                 *, bb, seq_len, seed_attn, seed_proj, seed_ffn, apply_dropout):
    rows = bb * seq_len
    scale = 1.0 / math.sqrt(HEAD_SIZE)

    x = x_ref[...].astype(jnp.float32).reshape(rows, N_EMBD)       # (rows, C)

    # ---- ln1 + fused Q|K|V projection (bf16 MXU operands, f32 accumulation) --
    xn = _layernorm(x, ln1g_ref[...], ln1b_ref[...], 1.0 / N_EMBD)
    qkv = jnp.dot(xn.astype(jnp.bfloat16), wqkv_ref[...],
                  preferred_element_type=jnp.float32)              # (rows, 3C)
    qkv = qkv.reshape(bb, seq_len, 3 * N_EMBD)                     # (Bb, T, 3C)

    # ---- causal multi-head attention: static head loop, batched over Bb ------
    t_i = lax.broadcasted_iota(jnp.int32, (bb, seq_len, seq_len), 1)
    k_i = lax.broadcasted_iota(jnp.int32, (bb, seq_len, seq_len), 2)
    causal = k_i <= t_i
    if apply_dropout:
        b_i = lax.broadcasted_iota(jnp.int32, (bb, seq_len, seq_len), 0)
        b0 = pl.program_id(0) * bb
        # Unique per (batch, query, key); per-head offset added inside the loop.
        attn_ctr0 = ((b0 + b_i) * N_HEAD) * (seq_len * seq_len) + t_i * seq_len + k_i

    head_outs = []
    for h in range(N_HEAD):
        qh = qkv[:, :, h * HEAD_SIZE:(h + 1) * HEAD_SIZE].astype(jnp.bfloat16)
        kh = qkv[:, :, N_EMBD + h * HEAD_SIZE:
                       N_EMBD + (h + 1) * HEAD_SIZE].astype(jnp.bfloat16)
        vh = qkv[:, :, 2 * N_EMBD + h * HEAD_SIZE:
                       2 * N_EMBD + (h + 1) * HEAD_SIZE].astype(jnp.bfloat16)
        s = jnp.einsum("btd,bkd->btk", qh, kh,
                       preferred_element_type=jnp.float32) * scale  # (Bb, T, T)
        s = jnp.where(causal, s, MASK_VALUE)
        p = jnp.exp(s - jnp.max(s, axis=-1, keepdims=True))
        p = p / jnp.sum(p, axis=-1, keepdims=True)
        if apply_dropout:                               # SDPA dropout on attn weights
            keep = _keep_mask(attn_ctr0 + h * seq_len * seq_len, seed_attn)
            p = jnp.where(keep, p * KEEP_SCALE, 0.0)
        head_outs.append(jnp.einsum("btk,bkd->btd", p.astype(jnp.bfloat16), vh,
                                    preferred_element_type=jnp.float32))
    att = jnp.concatenate(head_outs, axis=-1).reshape(rows, N_EMBD)  # concat heads

    # ---- shared dropout counters for the proj and FFN sites ------------------
    if apply_dropout:
        row0 = pl.program_id(0) * rows
        r_i = lax.broadcasted_iota(jnp.int32, (rows, N_EMBD), 0)
        c_i = lax.broadcasted_iota(jnp.int32, (rows, N_EMBD), 1)
        elem = (row0 + r_i) * N_EMBD + c_i

    # ---- MHA tail: proj(concat(heads)) -> Dropout; x1 = x + sa(ln1(x)) -------
    y = jnp.dot(att.astype(jnp.bfloat16), wp_ref[...],
                preferred_element_type=jnp.float32) + bp_ref[...]
    if apply_dropout:
        y = jnp.where(_keep_mask(elem, seed_proj), y * KEEP_SCALE, 0.0)
    x1 = x + y

    # ---- FeedForward on ln2(x1): Linear -> LayerNorm -> ReLU -> Linear -> Drop
    xn2 = _layernorm(x1, ln2g_ref[...], ln2b_ref[...], 1.0 / N_EMBD)
    hdn = jnp.dot(xn2.astype(jnp.bfloat16), w1_ref[...],
                  preferred_element_type=jnp.float32) + b1_ref[...]   # (rows, HIDDEN)
    hdn = jnp.maximum(_layernorm(hdn, lnfg_ref[...], lnfb_ref[...], 1.0 / HIDDEN), 0.0)
    f = jnp.dot(hdn.astype(jnp.bfloat16), w2_ref[...],
                preferred_element_type=jnp.float32) + b2_ref[...]     # (rows, C)
    if apply_dropout:
        f = jnp.where(_keep_mask(elem, seed_ffn), f * KEEP_SCALE, 0.0)

    o_ref[...] = (x1 + f).reshape(bb, seq_len, N_EMBD).astype(o_ref.dtype)


# ---------------------------------------------------------------------------
# Wrapper
# ---------------------------------------------------------------------------

def _pick_batch_block(batch, seq_len):
    """Batch elements per grid step: ~256 rows/step (bounds f32 FFN intermediate
    / spill pressure) while keeping >= 2 grid steps for megacore when possible."""
    bb = max(1, min(batch, 256 // max(seq_len, 1)))
    if batch >= 2:
        bb = min(bb, batch // 2)
    bb = max(bb, 1)
    while batch % bb:
        bb -= 1
    return bb


def _rep(shape):
    """BlockSpec for a small parameter that is identical for every grid step."""
    zeros = (0,) * len(shape)
    return pl.BlockSpec(shape, lambda i, z=zeros: z)


def block_forward(x, params, *, seed=0, apply_dropout=True, batch_block=None):
    """Block forward. x: (B, T, n_embd) -> (B, T, n_embd)."""
    (ln1_g, ln1_b, wqkv, wp, bp, ln2_g, ln2_b,
     w1, b1, lnf_g, lnf_b, w2, b2) = params
    B, T, C = x.shape
    assert C == N_EMBD and T <= BLOCK_SIZE

    bb = _pick_batch_block(B, T) if batch_block is None else int(batch_block)
    assert B % bb == 0, "batch_block must divide the batch size"
    grid = B // bb

    # Distinct static streams per dropout site.
    seed = int(seed)
    seed_attn = (seed * 2654435761 + 1) & 0xFFFFFFFF
    seed_proj = (seed * 2654435761 + 2) & 0xFFFFFFFF
    seed_ffn = (seed * 2654435761 + 3) & 0xFFFFFFFF

    return pl.pallas_call(
        functools.partial(block_kernel, bb=bb, seq_len=T,
                          seed_attn=seed_attn, seed_proj=seed_proj,
                          seed_ffn=seed_ffn, apply_dropout=apply_dropout),
        out_shape=jax.ShapeDtypeStruct((B, T, C), x.dtype),
        grid_spec=pltpu.PrefetchScalarGridSpec(
            num_scalar_prefetch=0,
            grid=(grid,),
            in_specs=[
                pl.BlockSpec((bb, T, C), lambda i: (i, 0, 0)),   # x (residual input)
                _rep((1, C)), _rep((1, C)),                      # ln1 gamma / beta
                _rep((C, 3 * C)),                                # W_qkv (bf16)
                _rep((C, C)), _rep((1, C)),                      # W_proj (bf16), b_proj
                _rep((1, C)), _rep((1, C)),                      # ln2 gamma / beta
                _rep((C, HIDDEN)), _rep((1, HIDDEN)),            # FFN W1 (bf16), b1
                _rep((1, HIDDEN)), _rep((1, HIDDEN)),            # FFN-LN gamma / beta
                _rep((HIDDEN, C)), _rep((1, C)),                 # FFN W2 (bf16), b2
            ],
            out_specs=pl.BlockSpec((bb, T, C), lambda i: (i, 0, 0)),
        ),
        compiler_params=pltpu.CompilerParams(
            dimension_semantics=("parallel",)),
    )(x, ln1_g, ln1_b, wqkv, wp, bp, ln2_g, ln2_b, w1, b1, lnf_g, lnf_b, w2, b2)


# ---------------------------------------------------------------------------
# Parameters / reference
# ---------------------------------------------------------------------------

def init_params(key):
    """Deterministic init matching the PyTorch module's parameter shapes.

    Linear weights stored transposed (in_features, out_features) so kernels
    compute x @ W; per-head K/Q/V weights are stacked and fused as W_qkv = [Wq|Wk|Wv].
    Matmul weights are bf16 (MXU operands, f32 accumulation); everything else f32.
    """
    ks = jax.random.split(key, 7)
    bc = 1.0 / math.sqrt(N_EMBD)
    bh = 1.0 / math.sqrt(HIDDEN)
    ln1_g = jnp.ones((1, N_EMBD), jnp.float32)
    ln1_b = jnp.zeros((1, N_EMBD), jnp.float32)
    wqkv = jax.random.uniform(ks[0], (N_EMBD, 3 * N_EMBD), jnp.float32, -bc, bc)
    wp = jax.random.uniform(ks[1], (N_EMBD, N_EMBD), jnp.float32, -bc, bc)
    bp = jax.random.uniform(ks[2], (1, N_EMBD), jnp.float32, -bc, bc)
    ln2_g = jnp.ones((1, N_EMBD), jnp.float32)
    ln2_b = jnp.zeros((1, N_EMBD), jnp.float32)
    w1 = jax.random.uniform(ks[3], (N_EMBD, HIDDEN), jnp.float32, -bc, bc)
    b1 = jax.random.uniform(ks[4], (1, HIDDEN), jnp.float32, -bc, bc)
    lnf_g = jnp.ones((1, HIDDEN), jnp.float32)
    lnf_b = jnp.zeros((1, HIDDEN), jnp.float32)
    w2 = jax.random.uniform(ks[5], (HIDDEN, N_EMBD), jnp.float32, -bh, bh)
    b2 = jax.random.uniform(ks[6], (1, N_EMBD), jnp.float32, -bh, bh)
    return (ln1_g, ln1_b, wqkv.astype(jnp.bfloat16),
            wp.astype(jnp.bfloat16), bp, ln2_g, ln2_b,
            w1.astype(jnp.bfloat16), b1, lnf_g, lnf_b,
            w2.astype(jnp.bfloat16), b2)


def block_reference_eval(x, params):
    """Pure-JAX eval-mode (no dropout) reference with the same dtype flow."""
    (ln1_g, ln1_b, wqkv, wp, bp, ln2_g, ln2_b,
     w1, b1, lnf_g, lnf_b, w2, b2) = params
    B, T, C = x.shape
    rows = B * T
    x2 = x.reshape(rows, C).astype(jnp.float32)

    xn = _layernorm(x2, ln1_g, ln1_b, 1.0 / N_EMBD)
    qkv = jnp.dot(xn.astype(jnp.bfloat16), wqkv, preferred_element_type=jnp.float32)

    def _split(cols):
        return cols.reshape(B, T, N_HEAD, HEAD_SIZE).transpose(0, 2, 1, 3)

    q, k, v = _split(qkv[:, :C]), _split(qkv[:, C:2 * C]), _split(qkv[:, 2 * C:])
    s = jnp.einsum("bhtd,bhkd->bhtk", q.astype(jnp.bfloat16), k.astype(jnp.bfloat16),
                   preferred_element_type=jnp.float32)
    s = s * (1.0 / math.sqrt(HEAD_SIZE))
    causal = jnp.arange(T)[None, :] <= jnp.arange(T)[:, None]
    s = jnp.where(causal, s, MASK_VALUE)
    p = jnp.exp(s - jnp.max(s, axis=-1, keepdims=True))
    p = p / jnp.sum(p, axis=-1, keepdims=True)
    att = jnp.einsum("bhtk,bhkd->bhtd", p.astype(jnp.bfloat16), v.astype(jnp.bfloat16),
                     preferred_element_type=jnp.float32)
    att2 = att.transpose(0, 2, 1, 3).reshape(rows, C)

    y = jnp.dot(att2.astype(jnp.bfloat16), wp, preferred_element_type=jnp.float32) + bp
    x1 = x2 + y
    xn2 = _layernorm(x1, ln2_g, ln2_b, 1.0 / N_EMBD)
    h = jnp.dot(xn2.astype(jnp.bfloat16), w1, preferred_element_type=jnp.float32) + b1
    h = jnp.maximum(_layernorm(h, lnf_g, lnf_b, 1.0 / HIDDEN), 0.0)
    f = jnp.dot(h.astype(jnp.bfloat16), w2, preferred_element_type=jnp.float32) + b2
    return (x1 + f).reshape(B, T, C).astype(x.dtype)


if __name__ == "__main__":
    key = jax.random.PRNGKey(0)
    kp, kx = jax.random.split(key)
    params = init_params(kp)

    B, T = 2, 8                       # small demo shapes (block_size=128 is the max)
    x = jax.random.normal(kx, (B, T, N_EMBD), jnp.float32)

    # Training-mode forward (dropout active, as a fresh nn.Module defaults to train()).
    fwd_train = jax.jit(functools.partial(block_forward, seed=0, apply_dropout=True))
    y = fwd_train(x, params)
    jax.block_until_ready(y)
    assert y.shape == (B, T, N_EMBD) and y.dtype == x.dtype
    assert bool(jnp.all(jnp.isfinite(y)))

    # Eval-mode (dropout = identity) check against the pure-JAX reference.
    fwd_eval = jax.jit(functools.partial(block_forward, apply_dropout=False))
    y_eval = fwd_eval(x, params)
    ref = block_reference_eval(x, params)
    jax.block_until_ready((y_eval, ref))
    max_err = float(jnp.max(jnp.abs(y_eval - ref)))
    assert jnp.allclose(y_eval, ref, atol=2e-3, rtol=2e-3), f"max abs err {max_err}"

    # Also exercise the full context length with >1 batch element per grid step.
    B2, T2 = 4, 128
    x2 = jax.random.normal(jax.random.PRNGKey(1), (B2, T2, N_EMBD), jnp.float32)
    y2 = jax.jit(functools.partial(block_forward, apply_dropout=False))(x2, params)
    ref2 = block_reference_eval(x2, params)
    jax.block_until_ready((y2, ref2))
    max_err2 = float(jnp.max(jnp.abs(y2 - ref2)))
    assert jnp.allclose(y2, ref2, atol=2e-3, rtol=2e-3), f"max abs err {max_err2}"

    print("KERNEL_OK")
</pallas_src>

<mosaic_0001>
module attributes {stable_mosaic.version = 11 : i64} {
  func.func @block_kernel(%arg0: i32, %arg1: memref<1x8x64xf32, #tpu.memory_space<vmem>>, %arg2: memref<1x64xf32, #tpu.memory_space<vmem>>, %arg3: memref<1x64xf32, #tpu.memory_space<vmem>>, %arg4: memref<64x192xbf16, #tpu.memory_space<vmem>>, %arg5: memref<64x64xbf16, #tpu.memory_space<vmem>>, %arg6: memref<1x64xf32, #tpu.memory_space<vmem>>, %arg7: memref<1x64xf32, #tpu.memory_space<vmem>>, %arg8: memref<1x64xf32, #tpu.memory_space<vmem>>, %arg9: memref<64x256xbf16, #tpu.memory_space<vmem>>, %arg10: memref<1x256xf32, #tpu.memory_space<vmem>>, %arg11: memref<1x256xf32, #tpu.memory_space<vmem>>, %arg12: memref<1x256xf32, #tpu.memory_space<vmem>>, %arg13: memref<256x64xbf16, #tpu.memory_space<vmem>>, %arg14: memref<1x64xf32, #tpu.memory_space<vmem>>, %arg15: memref<1x8x64xf32, #tpu.memory_space<vmem>>) attributes {dimension_semantics = [#tpu.dimension_semantics<parallel>], iteration_bounds = array<i64: 2>, scalar_prefetch = 0 : i64, scratch_operands = 0 : i64, tpu.core_type = #tpu.core_type<tc>, window_params = [{transform_indices = @transform_0, window_bounds = array<i64: 1, 8, 64>}, {pipeline_mode = #tpu.pipeline_mode<synchronous>, transform_indices = @transform_1, window_bounds = array<i64: 1, 64>}, {pipeline_mode = #tpu.pipeline_mode<synchronous>, transform_indices = @transform_2, window_bounds = array<i64: 1, 64>}, {pipeline_mode = #tpu.pipeline_mode<synchronous>, transform_indices = @transform_3, window_bounds = array<i64: 64, 192>}, {pipeline_mode = #tpu.pipeline_mode<synchronous>, transform_indices = @transform_4, window_bounds = array<i64: 64, 64>}, {pipeline_mode = #tpu.pipeline_mode<synchronous>, transform_indices = @transform_5, window_bounds = array<i64: 1, 64>}, {pipeline_mode = #tpu.pipeline_mode<synchronous>, transform_indices = @transform_6, window_bounds = array<i64: 1, 64>}, {pipeline_mode = #tpu.pipeline_mode<synchronous>, transform_indices = @transform_7, window_bounds = array<i64: 1, 64>}, {pipeline_mode = #tpu.pipeline_mode<synchronous>, transform_indices = @transform_8, window_bounds = array<i64: 64, 256>}, {pipeline_mode = #tpu.pipeline_mode<synchronous>, transform_indices = @transform_9, window_bounds = array<i64: 1, 256>}, {pipeline_mode = #tpu.pipeline_mode<synchronous>, transform_indices = @transform_10, window_bounds = array<i64: 1, 256>}, {pipeline_mode = #tpu.pipeline_mode<synchronous>, transform_indices = @transform_11, window_bounds = array<i64: 1, 256>}, {pipeline_mode = #tpu.pipeline_mode<synchronous>, transform_indices = @transform_12, window_bounds = array<i64: 256, 64>}, {pipeline_mode = #tpu.pipeline_mode<synchronous>, transform_indices = @transform_13, window_bounds = array<i64: 1, 64>}, {transform_indices = @transform_14, window_bounds = array<i64: 1, 8, 64>}]} {
    %c0 = arith.constant 0 : index
    %c0_0 = arith.constant 0 : index
    %c0_1 = arith.constant 0 : index
    %0 = vector.load %arg1[%c0, %c0_0, %c0_1] : memref<1x8x64xf32, #tpu.memory_space<vmem>>, vector<1x8x64xf32>
    %1 = vector.shape_cast %0 : vector<1x8x64xf32> to vector<8x64xf32>
    %c0_2 = arith.constant 0 : index
    %c0_3 = arith.constant 0 : index
    %2 = vector.load %arg2[%c0_2, %c0_3] : memref<1x64xf32, #tpu.memory_space<vmem>>, vector<1x64xf32>
    %c0_4 = arith.constant 0 : index
    %c0_5 = arith.constant 0 : index
    %3 = vector.load %arg3[%c0_4, %c0_5] : memref<1x64xf32, #tpu.memory_space<vmem>>, vector<1x64xf32>
    %cst = arith.constant dense<0.000000e+00> : vector<8xf32>
    %4 = vector.multi_reduction <add>, %1, %cst [1] : vector<8x64xf32> to vector<8xf32>
    %5 = vector.shape_cast %4 : vector<8xf32> to vector<8x1xf32>
    %6 = arith.mulf %1, %1 : vector<8x64xf32>
    %cst_6 = arith.constant dense<0.000000e+00> : vector<8xf32>
    %7 = vector.multi_reduction <add>, %6, %cst_6 [1] : vector<8x64xf32> to vector<8xf32>
    %8 = vector.shape_cast %7 : vector<8xf32> to vector<8x1xf32>
    %cst_7 = arith.constant 1.562500e-02 : f32
    %9 = vector.broadcast %cst_7 : f32 to vector<8x1xf32>
    %10 = arith.mulf %5, %9 : vector<8x1xf32>
    %cst_8 = arith.constant 1.562500e-02 : f32
    %11 = vector.broadcast %cst_8 : f32 to vector<8x1xf32>
    %12 = arith.mulf %8, %11 : vector<8x1xf32>
    %13 = arith.mulf %10, %10 : vector<8x1xf32>
    %14 = arith.subf %12, %13 : vector<8x1xf32>
    %cst_9 = arith.constant 0.000000e+00 : f32
    %15 = vector.broadcast %cst_9 : f32 to vector<8x1xf32>
    %16 = arith.maximumf %14, %15 : vector<8x1xf32>
    %17 = vector.broadcast %10 : vector<8x1xf32> to vector<8x64xf32>
    %18 = arith.subf %1, %17 : vector<8x64xf32>
    %cst_10 = arith.constant 9.99999974E-6 : f32
    %19 = vector.broadcast %cst_10 : f32 to vector<8x1xf32>
    %20 = arith.addf %16, %19 : vector<8x1xf32>
    %21 = math.rsqrt %20 : vector<8x1xf32>
    %22 = vector.broadcast %21 : vector<8x1xf32> to vector<8x64xf32>
    %23 = arith.mulf %18, %22 : vector<8x64xf32>
    %24 = vector.broadcast %2 : vector<1x64xf32> to vector<8x64xf32>
    %25 = arith.mulf %23, %24 : vector<8x64xf32>
    %26 = vector.broadcast %3 : vector<1x64xf32> to vector<8x64xf32>
    %27 = arith.addf %25, %26 : vector<8x64xf32>
    %28 = arith.truncf %27 : vector<8x64xf32> to vector<8x64xbf16>
    %c0_11 = arith.constant 0 : index
    %c0_12 = arith.constant 0 : index
    %29 = vector.load %arg4[%c0_11, %c0_12] : memref<64x192xbf16, #tpu.memory_space<vmem>>, vector<64x192xbf16>
    %cst_13 = arith.constant dense<0.000000e+00> : vector<8x192xf32>
    %30 = tpu.matmul %28, %29, %cst_13 {dimension_numbers = #tpu.dot_dimension_numbers<[1], [0], [0], [1], [0, 0, 1, 1], [], []>} : vector<8x64xbf16>, vector<64x192xbf16>, vector<8x192xf32> -> vector<8x192xf32>
    %31 = vector.shape_cast %30 : vector<8x192xf32> to vector<1x8x192xf32>
    %32 = tpu.iota {dimensions = array<i32: 1>} : vector<1x8x8xi32>
    %33 = tpu.iota {dimensions = array<i32: 2>} : vector<1x8x8xi32>
    %34 = arith.cmpi sle, %33, %32 : vector<1x8x8xi32>
    %35 = tpu.iota {dimensions = array<i32: 0>} : vector<1x8x8xi32>
    %c1_i32 = arith.constant 1 : i32
    %36 = arith.muli %arg0, %c1_i32 : i32
    %37 = vector.broadcast %36 : i32 to vector<1x8x8xi32>
    %38 = arith.addi %37, %35 : vector<1x8x8xi32>
    %c8_i32 = arith.constant 8 : i32
    %39 = vector.broadcast %c8_i32 : i32 to vector<1x8x8xi32>
    %40 = arith.muli %38, %39 : vector<1x8x8xi32>
    %c64_i32 = arith.constant 64 : i32
    %41 = vector.broadcast %c64_i32 : i32 to vector<1x8x8xi32>
    %42 = arith.muli %40, %41 : vector<1x8x8xi32>
    %c8_i32_14 = arith.constant 8 : i32
    %43 = vector.broadcast %c8_i32_14 : i32 to vector<1x8x8xi32>
    %44 = arith.muli %32, %43 : vector<1x8x8xi32>
    %45 = arith.addi %42, %44 : vector<1x8x8xi32>
    %46 = arith.addi %45, %33 : vector<1x8x8xi32>
    %47 = vector.extract_strided_slice %31 {offsets = [0, 0, 0], sizes = [1, 8, 8], strides = [1, 1, 1]} : vector<1x8x192xf32> to vector<1x8x8xf32>
    %48 = arith.truncf %47 : vector<1x8x8xf32> to vector<1x8x8xbf16>
    %49 = vector.extract_strided_slice %31 {offsets = [0, 0, 64], sizes = [1, 8, 8], strides = [1, 1, 1]} : vector<1x8x192xf32> to vector<1x8x8xf32>
    %50 = arith.truncf %49 : vector<1x8x8xf32> to vector<1x8x8xbf16>
    %51 = vector.extract_strided_slice %31 {offsets = [0, 0, 128], sizes = [1, 8, 8], strides = [1, 1, 1]} : vector<1x8x192xf32> to vector<1x8x8xf32>
    %52 = arith.truncf %51 : vector<1x8x8xf32> to vector<1x8x8xbf16>
    "tpu.trace_start"() <{level = 10 : i32, message = "btd,bkd->btk"}> : () -> ()
    %cst_15 = arith.constant dense<0.000000e+00> : vector<1x8x8xf32>
    %53 = tpu.matmul %48, %50, %cst_15 {dimension_numbers = #tpu.dot_dimension_numbers<[2], [2], [1], [1], [0, 0, 0, 1, 1, 1], [0], [0]>} : vector<1x8x8xbf16>, vector<1x8x8xbf16>, vector<1x8x8xf32> -> vector<1x8x8xf32>
    "tpu.trace_stop"() : () -> ()
    %cst_16 = arith.constant 0.353553385 : f32
    %54 = vector.broadcast %cst_16 : f32 to vector<1x8x8xf32>
    %55 = arith.mulf %53, %54 : vector<1x8x8xf32>
    %cst_17 = arith.constant -1.000000e+30 : f32
    %56 = vector.broadcast %cst_17 : f32 to vector<1x8x8xf32>
    %57 = arith.select %34, %55, %56 : vector<1x8x8xi1>, vector<1x8x8xf32>
    %cst_18 = arith.constant dense<0xFF800000> : vector<1x8xf32>
    %58 = vector.multi_reduction <maximumf>, %57, %cst_18 [2] : vector<1x8x8xf32> to vector<1x8xf32>
    %59 = vector.shape_cast %58 : vector<1x8xf32> to vector<1x8x1xf32>
    %60 = vector.broadcast %59 : vector<1x8x1xf32> to vector<1x8x8xf32>
    %61 = arith.subf %57, %60 : vector<1x8x8xf32>
    %62 = math.exp %61 : vector<1x8x8xf32>
    %cst_19 = arith.constant dense<0.000000e+00> : vector<1x8xf32>
    %63 = vector.multi_reduction <add>, %62, %cst_19 [2] : vector<1x8x8xf32> to vector<1x8xf32>
    %64 = vector.shape_cast %63 : vector<1x8xf32> to vector<1x8x1xf32>
    %65 = vector.broadcast %64 : vector<1x8x1xf32> to vector<1x8x8xf32>
    %66 = arith.divf %62, %65 : vector<1x8x8xf32>
    %c0_i32 = arith.constant 0 : i32
    %67 = vector.broadcast %c0_i32 : i32 to vector<1x8x8xi32>
    %68 = arith.addi %46, %67 : vector<1x8x8xi32>
    %c1_i32_20 = arith.constant 1 : i32
    %69 = vector.broadcast %c1_i32_20 : i32 to vector<1x8x8xi32>
    %70 = arith.xori %68, %69 : vector<1x8x8xi32>
    %c16_i32 = arith.constant 16 : i32
    %71 = vector.broadcast %c16_i32 : i32 to vector<1x8x8xi32>
    %72 = arith.shrui %70, %71 : vector<1x8x8xi32>
    %73 = arith.xori %70, %72 : vector<1x8x8xi32>
    %c2146121005_i32 = arith.constant 2146121005 : i32
    %74 = vector.broadcast %c2146121005_i32 : i32 to vector<1x8x8xi32>
    %75 = arith.muli %73, %74 : vector<1x8x8xi32>
    %c15_i32 = arith.constant 15 : i32
    %76 = vector.broadcast %c15_i32 : i32 to vector<1x8x8xi32>
    %77 = arith.shrui %75, %76 : vector<1x8x8xi32>
    %78 = arith.xori %75, %77 : vector<1x8x8xi32>
    %c-2073254261_i32 = arith.constant -2073254261 : i32
    %79 = vector.broadcast %c-2073254261_i32 : i32 to vector<1x8x8xi32>
    %80 = arith.muli %78, %79 : vector<1x8x8xi32>
    %c16_i32_21 = arith.constant 16 : i32
    %81 = vector.broadcast %c16_i32_21 : i32 to vector<1x8x8xi32>
    %82 = arith.shrui %80, %81 : vector<1x8x8xi32>
    %83 = arith.xori %80, %82 : vector<1x8x8xi32>
    %c16777215_i32 = arith.constant 16777215 : i32
    %84 = vector.broadcast %c16777215_i32 : i32 to vector<1x8x8xi32>
    %85 = arith.andi %83, %84 : vector<1x8x8xi32>
    %c6710886_i32 = arith.constant 6710886 : i32
    %86 = vector.broadcast %c6710886_i32 : i32 to vector<1x8x8xi32>
    %87 = arith.cmpi sge, %85, %86 : vector<1x8x8xi32>
    %cst_22 = arith.constant 1.66666663 : f32
    %88 = vector.broadcast %cst_22 : f32 to vector<1x8x8xf32>
    %89 = arith.mulf %66, %88 : vector<1x8x8xf32>
    %cst_23 = arith.constant 0.000000e+00 : f32
    %90 = vector.broadcast %cst_23 : f32 to vector<1x8x8xf32>
    %91 = arith.select %87, %89, %90 : vector<1x8x8xi1>, vector<1x8x8xf32>
    %92 = arith.truncf %91 : vector<1x8x8xf32> to vector<1x8x8xbf16>
    "tpu.trace_start"() <{level = 10 : i32, message = "btk,bkd->btd"}> : () -> ()
    %cst_24 = arith.constant dense<0.000000e+00> : vector<1x8x8xf32>
    %93 = tpu.matmul %92, %52, %cst_24 {dimension_numbers = #tpu.dot_dimension_numbers<[2], [1], [1], [2], [0, 0, 0, 1, 1, 2], [0], [0]>} : vector<1x8x8xbf16>, vector<1x8x8xbf16>, vector<1x8x8xf32> -> vector<1x8x8xf32>
    "tpu.trace_stop"() : () -> ()
    %94 = vector.extract_strided_slice %31 {offsets = [0, 0, 8], sizes = [1, 8, 8], strides = [1, 1, 1]} : vector<1x8x192xf32> to vector<1x8x8xf32>
    %95 = arith.truncf %94 : vector<1x8x8xf32> to vector<1x8x8xbf16>
    %96 = vector.extract_strided_slice %31 {offsets = [0, 0, 72], sizes = [1, 8, 8], strides = [1, 1, 1]} : vector<1x8x192xf32> to vector<1x8x8xf32>
    %97 = arith.truncf %96 : vector<1x8x8xf32> to vector<1x8x8xbf16>
    %98 = vector.extract_strided_slice %31 {offsets = [0, 0, 136], sizes = [1, 8, 8], strides = [1, 1, 1]} : vector<1x8x192xf32> to vector<1x8x8xf32>
    %99 = arith.truncf %98 : vector<1x8x8xf32> to vector<1x8x8xbf16>
    "tpu.trace_start"() <{level = 10 : i32, message = "btd,bkd->btk"}> : () -> ()
    %cst_25 = arith.constant dense<0.000000e+00> : vector<1x8x8xf32>
    %100 = tpu.matmul %95, %97, %cst_25 {dimension_numbers = #tpu.dot_dimension_numbers<[2], [2], [1], [1], [0, 0, 0, 1, 1, 1], [0], [0]>} : vector<1x8x8xbf16>, vector<1x8x8xbf16>, vector<1x8x8xf32> -> vector<1x8x8xf32>
    "tpu.trace_stop"() : () -> ()
    %cst_26 = arith.constant 0.353553385 : f32
    %101 = vector.broadcast %cst_26 : f32 to vector<1x8x8xf32>
    %102 = arith.mulf %100, %101 : vector<1x8x8xf32>
    %cst_27 = arith.constant -1.000000e+30 : f32
    %103 = vector.broadcast %cst_27 : f32 to vector<1x8x8xf32>
    %104 = arith.select %34, %102, %103 : vector<1x8x8xi1>, vector<1x8x8xf32>
    %cst_28 = arith.constant dense<0xFF800000> : vector<1x8xf32>
    %105 = vector.multi_reduction <maximumf>, %104, %cst_28 [2] : vector<1x8x8xf32> to vector<1x8xf32>
    %106 = vector.shape_cast %105 : vector<1x8xf32> to vector<1x8x1xf32>
    %107 = vector.broadcast %106 : vector<1x8x1xf32> to vector<1x8x8xf32>
    %108 = arith.subf %104, %107 : vector<1x8x8xf32>
    %109 = math.exp %108 : vector<1x8x8xf32>
    %cst_29 = arith.constant dense<0.000000e+00> : vector<1x8xf32>
    %110 = vector.multi_reduction <add>, %109, %cst_29 [2] : vector<1x8x8xf32> to vector<1x8xf32>
    %111 = vector.shape_cast %110 : vector<1x8xf32> to vector<1x8x1xf32>
    %112 = vector.broadcast %111 : vector<1x8x1xf32> to vector<1x8x8xf32>
    %113 = arith.divf %109, %112 : vector<1x8x8xf32>
    %c64_i32_30 = arith.constant 64 : i32
    %114 = vector.broadcast %c64_i32_30 : i32 to vector<1x8x8xi32>
    %115 = arith.addi %46, %114 : vector<1x8x8xi32>
    %c1_i32_31 = arith.constant 1 : i32
    %116 = vector.broadcast %c1_i32_31 : i32 to vector<1x8x8xi32>
    %117 = arith.xori %115, %116 : vector<1x8x8xi32>
    %c16_i32_32 = arith.constant 16 : i32
    %118 = vector.broadcast %c16_i32_32 : i32 to vector<1x8x8xi32>
    %119 = arith.shrui %117, %118 : vector<1x8x8xi32>
    %120 = arith.xori %117, %119 : vector<1x8x8xi32>
    %c2146121005_i32_33 = arith.constant 2146121005 : i32
    %121 = vector.broadcast %c2146121005_i32_33 : i32 to vector<1x8x8xi32>
    %122 = arith.muli %120, %121 : vector<1x8x8xi32>
    %c15_i32_34 = arith.constant 15 : i32
    %123 = vector.broadcast %c15_i32_34 : i32 to vector<1x8x8xi32>
    %124 = arith.shrui %122, %123 : vector<1x8x8xi32>
    %125 = arith.xori %122, %124 : vector<1x8x8xi32>
    %c-2073254261_i32_35 = arith.constant -2073254261 : i32
    %126 = vector.broadcast %c-2073254261_i32_35 : i32 to vector<1x8x8xi32>
    %127 = arith.muli %125, %126 : vector<1x8x8xi32>
    %c16_i32_36 = arith.constant 16 : i32
    %128 = vector.broadcast %c16_i32_36 : i32 to vector<1x8x8xi32>
    %129 = arith.shrui %127, %128 : vector<1x8x8xi32>
    %130 = arith.xori %127, %129 : vector<1x8x8xi32>
    %c16777215_i32_37 = arith.constant 16777215 : i32
    %131 = vector.broadcast %c16777215_i32_37 : i32 to vector<1x8x8xi32>
    %132 = arith.andi %130, %131 : vector<1x8x8xi32>
    %c6710886_i32_38 = arith.constant 6710886 : i32
    %133 = vector.broadcast %c6710886_i32_38 : i32 to vector<1x8x8xi32>
    %134 = arith.cmpi sge, %132, %133 : vector<1x8x8xi32>
    %cst_39 = arith.constant 1.66666663 : f32
    %135 = vector.broadcast %cst_39 : f32 to vector<1x8x8xf32>
    %136 = arith.mulf %113, %135 : vector<1x8x8xf32>
    %cst_40 = arith.constant 0.000000e+00 : f32
    %137 = vector.broadcast %cst_40 : f32 to vector<1x8x8xf32>
    %138 = arith.select %134, %136, %137 : vector<1x8x8xi1>, vector<1x8x8xf32>
    %139 = arith.truncf %138 : vector<1x8x8xf32> to vector<1x8x8xbf16>
    "tpu.trace_start"() <{level = 10 : i32, message = "btk,bkd->btd"}> : () -> ()
    %cst_41 = arith.constant dense<0.000000e+00> : vector<1x8x8xf32>
    %140 = tpu.matmul %139, %99, %cst_41 {dimension_numbers = #tpu.dot_dimension_numbers<[2], [1], [1], [2], [0, 0, 0, 1, 1, 2], [0], [0]>} : vector<1x8x8xbf16>, vector<1x8x8xbf16>, vector<1x8x8xf32> -> vector<1x8x8xf32>
    "tpu.trace_stop"() : () -> ()
    %141 = vector.extract_strided_slice %31 {offsets = [0, 0, 16], sizes = [1, 8, 8], strides = [1, 1, 1]} : vector<1x8x192xf32> to vector<1x8x8xf32>
    %142 = arith.truncf %141 : vector<1x8x8xf32> to vector<1x8x8xbf16>
    %143 = vector.extract_strided_slice %31 {offsets = [0, 0, 80], sizes = [1, 8, 8], strides = [1, 1, 1]} : vector<1x8x192xf32> to vector<1x8x8xf32>
    %144 = arith.truncf %143 : vector<1x8x8xf32> to vector<1x8x8xbf16>
    %145 = vector.extract_strided_slice %31 {offsets = [0, 0, 144], sizes = [1, 8, 8], strides = [1, 1, 1]} : vector<1x8x192xf32> to vector<1x8x8xf32>
    %146 = arith.truncf %145 : vector<1x8x8xf32> to vector<1x8x8xbf16>
    "tpu.trace_start"() <{level = 10 : i32, message = "btd,bkd->btk"}> : () -> ()
    %cst_42 = arith.constant dense<0.000000e+00> : vector<1x8x8xf32>
    %147 = tpu.matmul %142, %144, %cst_42 {dimension_numbers = #tpu.dot_dimension_numbers<[2], [2], [1], [1], [0, 0, 0, 1, 1, 1], [0], [0]>} : vector<1x8x8xbf16>, vector<1x8x8xbf16>, vector<1x8x8xf32> -> vector<1x8x8xf32>
    "tpu.trace_stop"() : () -> ()
    %cst_43 = arith.constant 0.353553385 : f32
    %148 = vector.broadcast %cst_43 : f32 to vector<1x8x8xf32>
    %149 = arith.mulf %147, %148 : vector<1x8x8xf32>
    %cst_44 = arith.constant -1.000000e+30 : f32
    %150 = vector.broadcast %cst_44 : f32 to vector<1x8x8xf32>
    %151 = arith.select %34, %149, %150 : vector<1x8x8xi1>, vector<1x8x8xf32>
    %cst_45 = arith.constant dense<0xFF800000> : vector<1x8xf32>
    %152 = vector.multi_reduction <maximumf>, %151, %cst_45 [2] : vector<1x8x8xf32> to vector<1x8xf32>
    %153 = vector.shape_cast %152 : vector<1x8xf32> to vector<1x8x1xf32>
    %154 = vector.broadcast %153 : vector<1x8x1xf32> to vector<1x8x8xf32>
    %155 = arith.subf %151, %154 : vector<1x8x8xf32>
    %156 = math.exp %155 : vector<1x8x8xf32>
    %cst_46 = arith.constant dense<0.000000e+00> : vector<1x8xf32>
    %157 = vector.multi_reduction <add>, %156, %cst_46 [2] : vector<1x8x8xf32> to vector<1x8xf32>
    %158 = vector.shape_cast %157 : vector<1x8xf32> to vector<1x8x1xf32>
    %159 = vector.broadcast %158 : vector<1x8x1xf32> to vector<1x8x8xf32>
    %160 = arith.divf %156, %159 : vector<1x8x8xf32>
    %c128_i32 = arith.constant 128 : i32
    %161 = vector.broadcast %c128_i32 : i32 to vector<1x8x8xi32>
    %162 = arith.addi %46, %161 : vector<1x8x8xi32>
    %c1_i32_47 = arith.constant 1 : i32
    %163 = vector.broadcast %c1_i32_47 : i32 to vector<1x8x8xi32>
    %164 = arith.xori %162, %163 : vector<1x8x8xi32>
    %c16_i32_48 = arith.constant 16 : i32
    %165 = vector.broadcast %c16_i32_48 : i32 to vector<1x8x8xi32>
    %166 = arith.shrui %164, %165 : vector<1x8x8xi32>
    %167 = arith.xori %164, %166 : vector<1x8x8xi32>
    %c2146121005_i32_49 = arith.constant 2146121005 : i32
    %168 = vector.broadcast %c2146121005_i32_49 : i32 to vector<1x8x8xi32>
    %169 = arith.muli %167, %168 : vector<1x8x8xi32>
    %c15_i32_50 = arith.constant 15 : i32
    %170 = vector.broadcast %c15_i32_50 : i32 to vector<1x8x8xi32>
    %171 = arith.shrui %169, %170 : vector<1x8x8xi32>
    %172 = arith.xori %169, %171 : vector<1x8x8xi32>
    %c-2073254261_i32_51 = arith.constant -2073254261 : i32
    %173 = vector.broadcast %c-2073254261_i32_51 : i32 to vector<1x8x8xi32>
    %174 = arith.muli %172, %173 : vector<1x8x8xi32>
    %c16_i32_52 = arith.constant 16 : i32
    %175 = vector.broadcast %c16_i32_52 : i32 to vector<1x8x8xi32>
    %176 = arith.shrui %174, %175 : vector<1x8x8xi32>
    %177 = arith.xori %174, %176 : vector<1x8x8xi32>
    %c16777215_i32_53 = arith.constant 16777215 : i32
    %178 = vector.broadcast %c16777215_i32_53 : i32 to vector<1x8x8xi32>
    %179 = arith.andi %177, %178 : vector<1x8x8xi32>
    %c6710886_i32_54 = arith.constant 6710886 : i32
    %180 = vector.broadcast %c6710886_i32_54 : i32 to vector<1x8x8xi32>
    %181 = arith.cmpi sge, %179, %180 : vector<1x8x8xi32>
    %cst_55 = arith.constant 1.66666663 : f32
    %182 = vector.broadcast %cst_55 : f32 to vector<1x8x8xf32>
    %183 = arith.mulf %160, %182 : vector<1x8x8xf32>
    %cst_56 = arith.constant 0.000000e+00 : f32
    %184 = vector.broadcast %cst_56 : f32 to vector<1x8x8xf32>
    %185 = arith.select %181, %183, %184 : vector<1x8x8xi1>, vector<1x8x8xf32>
    %186 = arith.truncf %185 : vector<1x8x8xf32> to vector<1x8x8xbf16>
    "tpu.trace_start"() <{level = 10 : i32, message = "btk,bkd->btd"}> : () -> ()
    %cst_57 = arith.constant dense<0.000000e+00> : vector<1x8x8xf32>
    %187 = tpu.matmul %186, %146, %cst_57 {dimension_numbers = #tpu.dot_dimension_numbers<[2], [1], [1], [2], [0, 0, 0, 1, 1, 2], [0], [0]>} : vector<1x8x8xbf16>, vector<1x8x8xbf16>, vector<1x8x8xf32> -> vector<1x8x8xf32>
    "tpu.trace_stop"() : () -> ()
    %188 = vector.extract_strided_slice %31 {offsets = [0, 0, 24], sizes = [1, 8, 8], strides = [1, 1, 1]} : vector<1x8x192xf32> to vector<1x8x8xf32>
    %189 = arith.truncf %188 : vector<1x8x8xf32> to vector<1x8x8xbf16>
    %190 = vector.extract_strided_slice %31 {offsets = [0, 0, 88], sizes = [1, 8, 8], strides = [1, 1, 1]} : vector<1x8x192xf32> to vector<1x8x8xf32>
    %191 = arith.truncf %190 : vector<1x8x8xf32> to vector<1x8x8xbf16>
    %192 = vector.extract_strided_slice %31 {offsets = [0, 0, 152], sizes = [1, 8, 8], strides = [1, 1, 1]} : vector<1x8x192xf32> to vector<1x8x8xf32>
    %193 = arith.truncf %192 : vector<1x8x8xf32> to vector<1x8x8xbf16>
    "tpu.trace_start"() <{level = 10 : i32, message = "btd,bkd->btk"}> : () -> ()
    %cst_58 = arith.constant dense<0.000000e+00> : vector<1x8x8xf32>
    %194 = tpu.matmul %189, %191, %cst_58 {dimension_numbers = #tpu.dot_dimension_numbers<[2], [2], [1], [1], [0, 0, 0, 1, 1, 1], [0], [0]>} : vector<1x8x8xbf16>, vector<1x8x8xbf16>, vector<1x8x8xf32> -> vector<1x8x8xf32>
    "tpu.trace_stop"() : () -> ()
    %cst_59 = arith.constant 0.353553385 : f32
    %195 = vector.broadcast %cst_59 : f32 to vector<1x8x8xf32>
    %196 = arith.mulf %194, %195 : vector<1x8x8xf32>
    %cst_60 = arith.constant -1.000000e+30 : f32
    %197 = vector.broadcast %cst_60 : f32 to vector<1x8x8xf32>
    %198 = arith.select %34, %196, %197 : vector<1x8x8xi1>, vector<1x8x8xf32>
    %cst_61 = arith.constant dense<0xFF800000> : vector<1x8xf32>
    %199 = vector.multi_reduction <maximumf>, %198, %cst_61 [2] : vector<1x8x8xf32> to vector<1x8xf32>
    %200 = vector.shape_cast %199 : vector<1x8xf32> to vector<1x8x1xf32>
    %201 = vector.broadcast %200 : vector<1x8x1xf32> to vector<1x8x8xf32>
    %202 = arith.subf %198, %201 : vector<1x8x8xf32>
    %203 = math.exp %202 : vector<1x8x8xf32>
    %cst_62 = arith.constant dense<0.000000e+00> : vector<1x8xf32>
    %204 = vector.multi_reduction <add>, %203, %cst_62 [2] : vector<1x8x8xf32> to vector<1x8xf32>
    %205 = vector.shape_cast %204 : vector<1x8xf32> to vector<1x8x1xf32>
    %206 = vector.broadcast %205 : vector<1x8x1xf32> to vector<1x8x8xf32>
    %207 = arith.divf %203, %206 : vector<1x8x8xf32>
    %c192_i32 = arith.constant 192 : i32
    %208 = vector.broadcast %c192_i32 : i32 to vector<1x8x8xi32>
    %209 = arith.addi %46, %208 : vector<1x8x8xi32>
    %c1_i32_63 = arith.constant 1 : i32
    %210 = vector.broadcast %c1_i32_63 : i32 to vector<1x8x8xi32>
    %211 = arith.xori %209, %210 : vector<1x8x8xi32>
    %c16_i32_64 = arith.constant 16 : i32
    %212 = vector.broadcast %c16_i32_64 : i32 to vector<1x8x8xi32>
    %213 = arith.shrui %211, %212 : vector<1x8x8xi32>
    %214 = arith.xori %211, %213 : vector<1x8x8xi32>
    %c2146121005_i32_65 = arith.constant 2146121005 : i32
    %215 = vector.broadcast %c2146121005_i32_65 : i32 to vector<1x8x8xi32>
    %216 = arith.muli %214, %215 : vector<1x8x8xi32>
    %c15_i32_66 = arith.constant 15 : i32
    %217 = vector.broadcast %c15_i32_66 : i32 to vector<1x8x8xi32>
    %218 = arith.shrui %216, %217 : vector<1x8x8xi32>
    %219 = arith.xori %216, %218 : vector<1x8x8xi32>
    %c-2073254261_i32_67 = arith.constant -2073254261 : i32
    %220 = vector.broadcast %c-2073254261_i32_67 : i32 to vector<1x8x8xi32>
    %221 = arith.muli %219, %220 : vector<1x8x8xi32>
    %c16_i32_68 = arith.constant 16 : i32
    %222 = vector.broadcast %c16_i32_68 : i32 to vector<1x8x8xi32>
    %223 = arith.shrui %221, %222 : vector<1x8x8xi32>
    %224 = arith.xori %221, %223 : vector<1x8x8xi32>
    %c16777215_i32_69 = arith.constant 16777215 : i32
    %225 = vector.broadcast %c16777215_i32_69 : i32 to vector<1x8x8xi32>
    %226 = arith.andi %224, %225 : vector<1x8x8xi32>
    %c6710886_i32_70 = arith.constant 6710886 : i32
    %227 = vector.broadcast %c6710886_i32_70 : i32 to vector<1x8x8xi32>
    %228 = arith.cmpi sge, %226, %227 : vector<1x8x8xi32>
    %cst_71 = arith.constant 1.66666663 : f32
    %229 = vector.broadcast %cst_71 : f32 to vector<1x8x8xf32>
    %230 = arith.mulf %207, %229 : vector<1x8x8xf32>
    %cst_72 = arith.constant 0.000000e+00 : f32
    %231 = vector.broadcast %cst_72 : f32 to vector<1x8x8xf32>
    %232 = arith.select %228, %230, %231 : vector<1x8x8xi1>, vector<1x8x8xf32>
    %233 = arith.truncf %232 : vector<1x8x8xf32> to vector<1x8x8xbf16>
    "tpu.trace_start"() <{level = 10 : i32, message = "btk,bkd->btd"}> : () -> ()
    %cst_73 = arith.constant dense<0.000000e+00> : vector<1x8x8xf32>
    %234 = tpu.matmul %233, %193, %cst_73 {dimension_numbers = #tpu.dot_dimension_numbers<[2], [1], [1], [2], [0, 0, 0, 1, 1, 2], [0], [0]>} : vector<1x8x8xbf16>, vector<1x8x8xbf16>, vector<1x8x8xf32> -> vector<1x8x8xf32>
    "tpu.trace_stop"() : () -> ()
    %235 = vector.extract_strided_slice %31 {offsets = [0, 0, 32], sizes = [1, 8, 8], strides = [1, 1, 1]} : vector<1x8x192xf32> to vector<1x8x8xf32>
    %236 = arith.truncf %235 : vector<1x8x8xf32> to vector<1x8x8xbf16>
    %237 = vector.extract_strided_slice %31 {offsets = [0, 0, 96], sizes = [1, 8, 8], strides = [1, 1, 1]} : vector<1x8x192xf32> to vector<1x8x8xf32>
    %238 = arith.truncf %237 : vector<1x8x8xf32> to vector<1x8x8xbf16>
    %239 = vector.extract_strided_slice %31 {offsets = [0, 0, 160], sizes = [1, 8, 8], strides = [1, 1, 1]} : vector<1x8x192xf32> to vector<1x8x8xf32>
    %240 = arith.truncf %239 : vector<1x8x8xf32> to vector<1x8x8xbf16>
    "tpu.trace_start"() <{level = 10 : i32, message = "btd,bkd->btk"}> : () -> ()
    %cst_74 = arith.constant dense<0.000000e+00> : vector<1x8x8xf32>
    %241 = tpu.matmul %236, %238, %cst_74 {dimension_numbers = #tpu.dot_dimension_numbers<[2], [2], [1], [1], [0, 0, 0, 1, 1, 1], [0], [0]>} : vector<1x8x8xbf16>, vector<1x8x8xbf16>, vector<1x8x8xf32> -> vector<1x8x8xf32>
    "tpu.trace_stop"() : () -> ()
    %cst_75 = arith.constant 0.353553385 : f32
    %242 = vector.broadcast %cst_75 : f32 to vector<1x8x8xf32>
    %243 = arith.mulf %241, %242 : vector<1x8x8xf32>
    %cst_76 = arith.constant -1.000000e+30 : f32
    %244 = vector.broadcast %cst_76 : f32 to vector<1x8x8xf32>
    %245 = arith.select %34, %243, %244 : vector<1x8x8xi1>, vector<1x8x8xf32>
    %cst_77 = arith.constant dense<0xFF800000> : vector<1x8xf32>
    %246 = vector.multi_reduction <maximumf>, %245, %cst_77 [2] : vector<1x8x8xf32> to vector<1x8xf32>
    %247 = vector.shape_cast %246 : vector<1x8xf32> to vector<1x8x1xf32>
    %248 = vector.broadcast %247 : vector<1x8x1xf32> to vector<1x8x8xf32>
    %249 = arith.subf %245, %248 : vector<1x8x8xf32>
    %250 = math.exp %249 : vector<1x8x8xf32>
    %cst_78 = arith.constant dense<0.000000e+00> : vector<1x8xf32>
    %251 = vector.multi_reduction <add>, %250, %cst_78 [2] : vector<1x8x8xf32> to vector<1x8xf32>
    %252 = vector.shape_cast %251 : vector<1x8xf32> to vector<1x8x1xf32>
    %253 = vector.broadcast %252 : vector<1x8x1xf32> to vector<1x8x8xf32>
    %254 = arith.divf %250, %253 : vector<1x8x8xf32>
    %c256_i32 = arith.constant 256 : i32
    %255 = vector.broadcast %c256_i32 : i32 to vector<1x8x8xi32>
    %256 = arith.addi %46, %255 : vector<1x8x8xi32>
    %c1_i32_79 = arith.constant 1 : i32
    %257 = vector.broadcast %c1_i32_79 : i32 to vector<1x8x8xi32>
    %258 = arith.xori %256, %257 : vector<1x8x8xi32>
    %c16_i32_80 = arith.constant 16 : i32
    %259 = vector.broadcast %c16_i32_80 : i32 to vector<1x8x8xi32>
    %260 = arith.shrui %258, %259 : vector<1x8x8xi32>
    %261 = arith.xori %258, %260 : vector<1x8x8xi32>
    %c2146121005_i32_81 = arith.constant 2146121005 : i32
    %262 = vector.broadcast %c2146121005_i32_81 : i32 to vector<1x8x8xi32>
    %263 = arith.muli %261, %262 : vector<1x8x8xi32>
    %c15_i32_82 = arith.constant 15 : i32
    %264 = vector.broadcast %c15_i32_82 : i32 to vector<1x8x8xi32>
    %265 = arith.shrui %263, %264 : vector<1x8x8xi32>
    %266 = arith.xori %263, %265 : vector<1x8x8xi32>
    %c-2073254261_i32_83 = arith.constant -2073254261 : i32
    %267 = vector.broadcast %c-2073254261_i32_83 : i32 to vector<1x8x8xi32>
    %268 = arith.muli %266, %267 : vector<1x8x8xi32>
    %c16_i32_84 = arith.constant 16 : i32
    %269 = vector.broadcast %c16_i32_84 : i32 to vector<1x8x8xi32>
    %270 = arith.shrui %268, %269 : vector<1x8x8xi32>
    %271 = arith.xori %268, %270 : vector<1x8x8xi32>
    %c16777215_i32_85 = arith.constant 16777215 : i32
    %272 = vector.broadcast %c16777215_i32_85 : i32 to vector<1x8x8xi32>
    %273 = arith.andi %271, %272 : vector<1x8x8xi32>
    %c6710886_i32_86 = arith.constant 6710886 : i32
    %274 = vector.broadcast %c6710886_i32_86 : i32 to vector<1x8x8xi32>
    %275 = arith.cmpi sge, %273, %274 : vector<1x8x8xi32>
    %cst_87 = arith.constant 1.66666663 : f32
    %276 = vector.broadcast %cst_87 : f32 to vector<1x8x8xf32>
    %277 = arith.mulf %254, %276 : vector<1x8x8xf32>
    %cst_88 = arith.constant 0.000000e+00 : f32
    %278 = vector.broadcast %cst_88 : f32 to vector<1x8x8xf32>
    %279 = arith.select %275, %277, %278 : vector<1x8x8xi1>, vector<1x8x8xf32>
    %280 = arith.truncf %279 : vector<1x8x8xf32> to vector<1x8x8xbf16>
    "tpu.trace_start"() <{level = 10 : i32, message = "btk,bkd->btd"}> : () -> ()
    %cst_89 = arith.constant dense<0.000000e+00> : vector<1x8x8xf32>
    %281 = tpu.matmul %280, %240, %cst_89 {dimension_numbers = #tpu.dot_dimension_numbers<[2], [1], [1], [2], [0, 0, 0, 1, 1, 2], [0], [0]>} : vector<1x8x8xbf16>, vector<1x8x8xbf16>, vector<1x8x8xf32> -> vector<1x8x8xf32>
    "tpu.trace_stop"() : () -> ()
    %282 = vector.extract_strided_slice %31 {offsets = [0, 0, 40], sizes = [1, 8, 8], strides = [1, 1, 1]} : vector<1x8x192xf32> to vector<1x8x8xf32>
    %283 = arith.truncf %282 : vector<1x8x8xf32> to vector<1x8x8xbf16>
    %284 = vector.extract_strided_slice %31 {offsets = [0, 0, 104], sizes = [1, 8, 8], strides = [1, 1, 1]} : vector<1x8x192xf32> to vector<1x8x8xf32>
    %285 = arith.truncf %284 : vector<1x8x8xf32> to vector<1x8x8xbf16>
    %286 = vector.extract_strided_slice %31 {offsets = [0, 0, 168], sizes = [1, 8, 8], strides = [1, 1, 1]} : vector<1x8x192xf32> to vector<1x8x8xf32>
    %287 = arith.truncf %286 : vector<1x8x8xf32> to vector<1x8x8xbf16>
    "tpu.trace_start"() <{level = 10 : i32, message = "btd,bkd->btk"}> : () -> ()
    %cst_90 = arith.constant dense<0.000000e+00> : vector<1x8x8xf32>
    %288 = tpu.matmul %283, %285, %cst_90 {dimension_numbers = #tpu.dot_dimension_numbers<[2], [2], [1], [1], [0, 0, 0, 1, 1, 1], [0], [0]>} : vector<1x8x8xbf16>, vector<1x8x8xbf16>, vector<1x8x8xf32> -> vector<1x8x8xf32>
    "tpu.trace_stop"() : () -> ()
    %cst_91 = arith.constant 0.353553385 : f32
    %289 = vector.broadcast %cst_91 : f32 to vector<1x8x8xf32>
    %290 = arith.mulf %288, %289 : vector<1x8x8xf32>
    %cst_92 = arith.constant -1.000000e+30 : f32
    %291 = vector.broadcast %cst_92 : f32 to vector<1x8x8xf32>
    %292 = arith.select %34, %290, %291 : vector<1x8x8xi1>, vector<1x8x8xf32>
    %cst_93 = arith.constant dense<0xFF800000> : vector<1x8xf32>
    %293 = vector.multi_reduction <maximumf>, %292, %cst_93 [2] : vector<1x8x8xf32> to vector<1x8xf32>
    %294 = vector.shape_cast %293 : vector<1x8xf32> to vector<1x8x1xf32>
    %295 = vector.broadcast %294 : vector<1x8x1xf32> to vector<1x8x8xf32>
    %296 = arith.subf %292, %295 : vector<1x8x8xf32>
    %297 = math.exp %296 : vector<1x8x8xf32>
    %cst_94 = arith.constant dense<0.000000e+00> : vector<1x8xf32>
    %298 = vector.multi_reduction <add>, %297, %cst_94 [2] : vector<1x8x8xf32> to vector<1x8xf32>
    %299 = vector.shape_cast %298 : vector<1x8xf32> to vector<1x8x1xf32>
    %300 = vector.broadcast %299 : vector<1x8x1xf32> to vector<1x8x8xf32>
    %301 = arith.divf %297, %300 : vector<1x8x8xf32>
    %c320_i32 = arith.constant 320 : i32
    %302 = vector.broadcast %c320_i32 : i32 to vector<1x8x8xi32>
    %303 = arith.addi %46, %302 : vector<1x8x8xi32>
    %c1_i32_95 = arith.constant 1 : i32
    %304 = vector.broadcast %c1_i32_95 : i32 to vector<1x8x8xi32>
    %305 = arith.xori %303, %304 : vector<1x8x8xi32>
    %c16_i32_96 = arith.constant 16 : i32
    %306 = vector.broadcast %c16_i32_96 : i32 to vector<1x8x8xi32>
    %307 = arith.shrui %305, %306 : vector<1x8x8xi32>
    %308 = arith.xori %305, %307 : vector<1x8x8xi32>
    %c2146121005_i32_97 = arith.constant 2146121005 : i32
    %309 = vector.broadcast %c2146121005_i32_97 : i32 to vector<1x8x8xi32>
    %310 = arith.muli %308, %309 : vector<1x8x8xi32>
    %c15_i32_98 = arith.constant 15 : i32
    %311 = vector.broadcast %c15_i32_98 : i32 to vector<1x8x8xi32>
    %312 = arith.shrui %310, %311 : vector<1x8x8xi32>
    %313 = arith.xori %310, %312 : vector<1x8x8xi32>
    %c-2073254261_i32_99 = arith.constant -2073254261 : i32
    %314 = vector.broadcast %c-2073254261_i32_99 : i32 to vector<1x8x8xi32>
    %315 = arith.muli %313, %314 : vector<1x8x8xi32>
    %c16_i32_100 = arith.constant 16 : i32
    %316 = vector.broadcast %c16_i32_100 : i32 to vector<1x8x8xi32>
    %317 = arith.shrui %315, %316 : vector<1x8x8xi32>
    %318 = arith.xori %315, %317 : vector<1x8x8xi32>
    %c16777215_i32_101 = arith.constant 16777215 : i32
    %319 = vector.broadcast %c16777215_i32_101 : i32 to vector<1x8x8xi32>
    %320 = arith.andi %318, %319 : vector<1x8x8xi32>
    %c6710886_i32_102 = arith.constant 6710886 : i32
    %321 = vector.broadcast %c6710886_i32_102 : i32 to vector<1x8x8xi32>
    %322 = arith.cmpi sge, %320, %321 : vector<1x8x8xi32>
    %cst_103 = arith.constant 1.66666663 : f32
    %323 = vector.broadcast %cst_103 : f32 to vector<1x8x8xf32>
    %324 = arith.mulf %301, %323 : vector<1x8x8xf32>
    %cst_104 = arith.constant 0.000000e+00 : f32
    %325 = vector.broadcast %cst_104 : f32 to vector<1x8x8xf32>
    %326 = arith.select %322, %324, %325 : vector<1x8x8xi1>, vector<1x8x8xf32>
    %327 = arith.truncf %326 : vector<1x8x8xf32> to vector<1x8x8xbf16>
    "tpu.trace_start"() <{level = 10 : i32, message = "btk,bkd->btd"}> : () -> ()
    %cst_105 = arith.constant dense<0.000000e+00> : vector<1x8x8xf32>
    %328 = tpu.matmul %327, %287, %cst_105 {dimension_numbers = #tpu.dot_dimension_numbers<[2], [1], [1], [2], [0, 0, 0, 1, 1, 2], [0], [0]>} : vector<1x8x8xbf16>, vector<1x8x8xbf16>, vector<1x8x8xf32> -> vector<1x8x8xf32>
    "tpu.trace_stop"() : () -> ()
    %329 = vector.extract_strided_slice %31 {offsets = [0, 0, 48], sizes = [1, 8, 8], strides = [1, 1, 1]} : vector<1x8x192xf32> to vector<1x8x8xf32>
    %330 = arith.truncf %329 : vector<1x8x8xf32> to vector<1x8x8xbf16>
    %331 = vector.extract_strided_slice %31 {offsets = [0, 0, 112], sizes = [1, 8, 8], strides = [1, 1, 1]} : vector<1x8x192xf32> to vector<1x8x8xf32>
    %332 = arith.truncf %331 : vector<1x8x8xf32> to vector<1x8x8xbf16>
    %333 = vector.extract_strided_slice %31 {offsets = [0, 0, 176], sizes = [1, 8, 8], strides = [1, 1, 1]} : vector<1x8x192xf32> to vector<1x8x8xf32>
    %334 = arith.truncf %333 : vector<1x8x8xf32> to vector<1x8x8xbf16>
    "tpu.trace_start"() <{level = 10 : i32, message = "btd,bkd->btk"}> : () -> ()
    %cst_106 = arith.constant dense<0.000000e+00> : vector<1x8x8xf32>
    %335 = tpu.matmul %330, %332, %cst_106 {dimension_numbers = #tpu.dot_dimension_numbers<[2], [2], [1], [1], [0, 0, 0, 1, 1, 1], [0], [0]>} : vector<1x8x8xbf16>, vector<1x8x8xbf16>, vector<1x8x8xf32> -> vector<1x8x8xf32>
    "tpu.trace_stop"() : () -> ()
    %cst_107 = arith.constant 0.353553385 : f32
    %336 = vector.broadcast %cst_107 : f32 to vector<1x8x8xf32>
    %337 = arith.mulf %335, %336 : vector<1x8x8xf32>
    %cst_108 = arith.constant -1.000000e+30 : f32
    %338 = vector.broadcast %cst_108 : f32 to vector<1x8x8xf32>
    %339 = arith.select %34, %337, %338 : vector<1x8x8xi1>, vector<1x8x8xf32>
    %cst_109 = arith.constant dense<0xFF800000> : vector<1x8xf32>
    %340 = vector.multi_reduction <maximumf>, %339, %cst_109 [2] : vector<1x8x8xf32> to vector<1x8xf32>
    %341 = vector.shape_cast %340 : vector<1x8xf32> to vector<1x8x1xf32>
    %342 = vector.broadcast %341 : vector<1x8x1xf32> to vector<1x8x8xf32>
    %343 = arith.subf %339, %342 : vector<1x8x8xf32>
    %344 = math.exp %343 : vector<1x8x8xf32>
    %cst_110 = arith.constant dense<0.000000e+00> : vector<1x8xf32>
    %345 = vector.multi_reduction <add>, %344, %cst_110 [2] : vector<1x8x8xf32> to vector<1x8xf32>
    %346 = vector.shape_cast %345 : vector<1x8xf32> to vector<1x8x1xf32>
    %347 = vector.broadcast %346 : vector<1x8x1xf32> to vector<1x8x8xf32>
    %348 = arith.divf %344, %347 : vector<1x8x8xf32>
    %c384_i32 = arith.constant 384 : i32
    %349 = vector.broadcast %c384_i32 : i32 to vector<1x8x8xi32>
    %350 = arith.addi %46, %349 : vector<1x8x8xi32>
    %c1_i32_111 = arith.constant 1 : i32
    %351 = vector.broadcast %c1_i32_111 : i32 to vector<1x8x8xi32>
    %352 = arith.xori %350, %351 : vector<1x8x8xi32>
    %c16_i32_112 = arith.constant 16 : i32
    %353 = vector.broadcast %c16_i32_112 : i32 to vector<1x8x8xi32>
    %354 = arith.shrui %352, %353 : vector<1x8x8xi32>
    %355 = arith.xori %352, %354 : vector<1x8x8xi32>
    %c2146121005_i32_113 = arith.constant 2146121005 : i32
    %356 = vector.broadcast %c2146121005_i32_113 : i32 to vector<1x8x8xi32>
    %357 = arith.muli %355, %356 : vector<1x8x8xi32>
    %c15_i32_114 = arith.constant 15 : i32
    %358 = vector.broadcast %c15_i32_114 : i32 to vector<1x8x8xi32>
    %359 = arith.shrui %357, %358 : vector<1x8x8xi32>
    %360 = arith.xori %357, %359 : vector<1x8x8xi32>
    %c-2073254261_i32_115 = arith.constant -2073254261 : i32
    %361 = vector.broadcast %c-2073254261_i32_115 : i32 to vector<1x8x8xi32>
    %362 = arith.muli %360, %361 : vector<1x8x8xi32>
    %c16_i32_116 = arith.constant 16 : i32
    %363 = vector.broadcast %c16_i32_116 : i32 to vector<1x8x8xi32>
    %364 = arith.shrui %362, %363 : vector<1x8x8xi32>
    %365 = arith.xori %362, %364 : vector<1x8x8xi32>
    %c16777215_i32_117 = arith.constant 16777215 : i32
    %366 = vector.broadcast %c16777215_i32_117 : i32 to vector<1x8x8xi32>
    %367 = arith.andi %365, %366 : vector<1x8x8xi32>
    %c6710886_i32_118 = arith.constant 6710886 : i32
    %368 = vector.broadcast %c6710886_i32_118 : i32 to vector<1x8x8xi32>
    %369 = arith.cmpi sge, %367, %368 : vector<1x8x8xi32>
    %cst_119 = arith.constant 1.66666663 : f32
    %370 = vector.broadcast %cst_119 : f32 to vector<1x8x8xf32>
    %371 = arith.mulf %348, %370 : vector<1x8x8xf32>
    %cst_120 = arith.constant 0.000000e+00 : f32
    %372 = vector.broadcast %cst_120 : f32 to vector<1x8x8xf32>
    %373 = arith.select %369, %371, %372 : vector<1x8x8xi1>, vector<1x8x8xf32>
    %374 = arith.truncf %373 : vector<1x8x8xf32> to vector<1x8x8xbf16>
    "tpu.trace_start"() <{level = 10 : i32, message = "btk,bkd->btd"}> : () -> ()
    %cst_121 = arith.constant dense<0.000000e+00> : vector<1x8x8xf32>
    %375 = tpu.matmul %374, %334, %cst_121 {dimension_numbers = #tpu.dot_dimension_numbers<[2], [1], [1], [2], [0, 0, 0, 1, 1, 2], [0], [0]>} : vector<1x8x8xbf16>, vector<1x8x8xbf16>, vector<1x8x8xf32> -> vector<1x8x8xf32>
    "tpu.trace_stop"() : () -> ()
    %376 = vector.extract_strided_slice %31 {offsets = [0, 0, 56], sizes = [1, 8, 8], strides = [1, 1, 1]} : vector<1x8x192xf32> to vector<1x8x8xf32>
    %377 = arith.truncf %376 : vector<1x8x8xf32> to vector<1x8x8xbf16>
    %378 = vector.extract_strided_slice %31 {offsets = [0, 0, 120], sizes = [1, 8, 8], strides = [1, 1, 1]} : vector<1x8x192xf32> to vector<1x8x8xf32>
    %379 = arith.truncf %378 : vector<1x8x8xf32> to vector<1x8x8xbf16>
    %380 = vector.extract_strided_slice %31 {offsets = [0, 0, 184], sizes = [1, 8, 8], strides = [1, 1, 1]} : vector<1x8x192xf32> to vector<1x8x8xf32>
    %381 = arith.truncf %380 : vector<1x8x8xf32> to vector<1x8x8xbf16>
    "tpu.trace_start"() <{level = 10 : i32, message = "btd,bkd->btk"}> : () -> ()
    %cst_122 = arith.constant dense<0.000000e+00> : vector<1x8x8xf32>
    %382 = tpu.matmul %377, %379, %cst_122 {dimension_numbers = #tpu.dot_dimension_numbers<[2], [2], [1], [1], [0, 0, 0, 1, 1, 1], [0], [0]>} : vector<1x8x8xbf16>, vector<1x8x8xbf16>, vector<1x8x8xf32> -> vector<1x8x8xf32>
    "tpu.trace_stop"() : () -> ()
    %cst_123 = arith.constant 0.353553385 : f32
    %383 = vector.broadcast %cst_123 : f32 to vector<1x8x8xf32>
    %384 = arith.mulf %382, %383 : vector<1x8x8xf32>
    %cst_124 = arith.constant -1.000000e+30 : f32
    %385 = vector.broadcast %cst_124 : f32 to vector<1x8x8xf32>
    %386 = arith.select %34, %384, %385 : vector<1x8x8xi1>, vector<1x8x8xf32>
    %cst_125 = arith.constant dense<0xFF800000> : vector<1x8xf32>
    %387 = vector.multi_reduction <maximumf>, %386, %cst_125 [2] : vector<1x8x8xf32> to vector<1x8xf32>
    %388 = vector.shape_cast %387 : vector<1x8xf32> to vector<1x8x1xf32>
    %389 = vector.broadcast %388 : vector<1x8x1xf32> to vector<1x8x8xf32>
    %390 = arith.subf %386, %389 : vector<1x8x8xf32>
    %391 = math.exp %390 : vector<1x8x8xf32>
    %cst_126 = arith.constant dense<0.000000e+00> : vector<1x8xf32>
    %392 = vector.multi_reduction <add>, %391, %cst_126 [2] : vector<1x8x8xf32> to vector<1x8xf32>
    %393 = vector.shape_cast %392 : vector<1x8xf32> to vector<1x8x1xf32>
    %394 = vector.broadcast %393 : vector<1x8x1xf32> to vector<1x8x8xf32>
    %395 = arith.divf %391, %394 : vector<1x8x8xf32>
    %c448_i32 = arith.constant 448 : i32
    %396 = vector.broadcast %c448_i32 : i32 to vector<1x8x8xi32>
    %397 = arith.addi %46, %396 : vector<1x8x8xi32>
    %c1_i32_127 = arith.constant 1 : i32
    %398 = vector.broadcast %c1_i32_127 : i32 to vector<1x8x8xi32>
    %399 = arith.xori %397, %398 : vector<1x8x8xi32>
    %c16_i32_128 = arith.constant 16 : i32
    %400 = vector.broadcast %c16_i32_128 : i32 to vector<1x8x8xi32>
    %401 = arith.shrui %399, %400 : vector<1x8x8xi32>
    %402 = arith.xori %399, %401 : vector<1x8x8xi32>
    %c2146121005_i32_129 = arith.constant 2146121005 : i32
    %403 = vector.broadcast %c2146121005_i32_129 : i32 to vector<1x8x8xi32>
    %404 = arith.muli %402, %403 : vector<1x8x8xi32>
    %c15_i32_130 = arith.constant 15 : i32
    %405 = vector.broadcast %c15_i32_130 : i32 to vector<1x8x8xi32>
    %406 = arith.shrui %404, %405 : vector<1x8x8xi32>
    %407 = arith.xori %404, %406 : vector<1x8x8xi32>
    %c-2073254261_i32_131 = arith.constant -2073254261 : i32
    %408 = vector.broadcast %c-2073254261_i32_131 : i32 to vector<1x8x8xi32>
    %409 = arith.muli %407, %408 : vector<1x8x8xi32>
    %c16_i32_132 = arith.constant 16 : i32
    %410 = vector.broadcast %c16_i32_132 : i32 to vector<1x8x8xi32>
    %411 = arith.shrui %409, %410 : vector<1x8x8xi32>
    %412 = arith.xori %409, %411 : vector<1x8x8xi32>
    %c16777215_i32_133 = arith.constant 16777215 : i32
    %413 = vector.broadcast %c16777215_i32_133 : i32 to vector<1x8x8xi32>
    %414 = arith.andi %412, %413 : vector<1x8x8xi32>
    %c6710886_i32_134 = arith.constant 6710886 : i32
    %415 = vector.broadcast %c6710886_i32_134 : i32 to vector<1x8x8xi32>
    %416 = arith.cmpi sge, %414, %415 : vector<1x8x8xi32>
    %cst_135 = arith.constant 1.66666663 : f32
    %417 = vector.broadcast %cst_135 : f32 to vector<1x8x8xf32>
    %418 = arith.mulf %395, %417 : vector<1x8x8xf32>
    %cst_136 = arith.constant 0.000000e+00 : f32
    %419 = vector.broadcast %cst_136 : f32 to vector<1x8x8xf32>
    %420 = arith.select %416, %418, %419 : vector<1x8x8xi1>, vector<1x8x8xf32>
    %421 = arith.truncf %420 : vector<1x8x8xf32> to vector<1x8x8xbf16>
    "tpu.trace_start"() <{level = 10 : i32, message = "btk,bkd->btd"}> : () -> ()
    %cst_137 = arith.constant dense<0.000000e+00> : vector<1x8x8xf32>
    %422 = tpu.matmul %421, %381, %cst_137 {dimension_numbers = #tpu.dot_dimension_numbers<[2], [1], [1], [2], [0, 0, 0, 1, 1, 2], [0], [0]>} : vector<1x8x8xbf16>, vector<1x8x8xbf16>, vector<1x8x8xf32> -> vector<1x8x8xf32>
    "tpu.trace_stop"() : () -> ()
    %423 = tpu.concatenate %93, %140, %187, %234, %281, %328, %375, %422 in 2 : vector<1x8x8xf32>, vector<1x8x8xf32>, vector<1x8x8xf32>, vector<1x8x8xf32>, vector<1x8x8xf32>, vector<1x8x8xf32>, vector<1x8x8xf32>, vector<1x8x8xf32> -> vector<1x8x64xf32>
    %424 = vector.shape_cast %423 : vector<1x8x64xf32> to vector<8x64xf32>
    %c8_i32_138 = arith.constant 8 : i32
    %425 = arith.muli %arg0, %c8_i32_138 : i32
    %426 = tpu.iota {dimensions = array<i32: 0>} : vector<8x64xi32>
    %427 = tpu.iota {dimensions = array<i32: 1>} : vector<8x64xi32>
    %428 = vector.broadcast %425 : i32 to vector<8x64xi32>
    %429 = arith.addi %428, %426 : vector<8x64xi32>
    %c64_i32_139 = arith.constant 64 : i32
    %430 = vector.broadcast %c64_i32_139 : i32 to vector<8x64xi32>
    %431 = arith.muli %429, %430 : vector<8x64xi32>
    %432 = arith.addi %431, %427 : vector<8x64xi32>
    %433 = arith.truncf %424 : vector<8x64xf32> to vector<8x64xbf16>
    %c0_140 = arith.constant 0 : index
    %c0_141 = arith.constant 0 : index
    %434 = vector.load %arg5[%c0_140, %c0_141] : memref<64x64xbf16, #tpu.memory_space<vmem>>, vector<64x64xbf16>
    %cst_142 = arith.constant dense<0.000000e+00> : vector<8x64xf32>
    %435 = tpu.matmul %433, %434, %cst_142 {dimension_numbers = #tpu.dot_dimension_numbers<[1], [0], [0], [1], [0, 0, 1, 1], [], []>} : vector<8x64xbf16>, vector<64x64xbf16>, vector<8x64xf32> -> vector<8x64xf32>
    %c0_143 = arith.constant 0 : index
    %c0_144 = arith.constant 0 : index
    %436 = vector.load %arg6[%c0_143, %c0_144] : memref<1x64xf32, #tpu.memory_space<vmem>>, vector<1x64xf32>
    %437 = vector.broadcast %436 : vector<1x64xf32> to vector<8x64xf32>
    %438 = arith.addf %435, %437 : vector<8x64xf32>
    %c2_i32 = arith.constant 2 : i32
    %439 = vector.broadcast %c2_i32 : i32 to vector<8x64xi32>
    %440 = arith.xori %432, %439 : vector<8x64xi32>
    %c16_i32_145 = arith.constant 16 : i32
    %441 = vector.broadcast %c16_i32_145 : i32 to vector<8x64xi32>
    %442 = arith.shrui %440, %441 : vector<8x64xi32>
    %443 = arith.xori %440, %442 : vector<8x64xi32>
    %c2146121005_i32_146 = arith.constant 2146121005 : i32
    %444 = vector.broadcast %c2146121005_i32_146 : i32 to vector<8x64xi32>
    %445 = arith.muli %443, %444 : vector<8x64xi32>
    %c15_i32_147 = arith.constant 15 : i32
    %446 = vector.broadcast %c15_i32_147 : i32 to vector<8x64xi32>
    %447 = arith.shrui %445, %446 : vector<8x64xi32>
    %448 = arith.xori %445, %447 : vector<8x64xi32>
    %c-2073254261_i32_148 = arith.constant -2073254261 : i32
    %449 = vector.broadcast %c-2073254261_i32_148 : i32 to vector<8x64xi32>
    %450 = arith.muli %448, %449 : vector<8x64xi32>
    %c16_i32_149 = arith.constant 16 : i32
    %451 = vector.broadcast %c16_i32_149 : i32 to vector<8x64xi32>
    %452 = arith.shrui %450, %451 : vector<8x64xi32>
    %453 = arith.xori %450, %452 : vector<8x64xi32>
    %c16777215_i32_150 = arith.constant 16777215 : i32
    %454 = vector.broadcast %c16777215_i32_150 : i32 to vector<8x64xi32>
    %455 = arith.andi %453, %454 : vector<8x64xi32>
    %c6710886_i32_151 = arith.constant 6710886 : i32
    %456 = vector.broadcast %c6710886_i32_151 : i32 to vector<8x64xi32>
    %457 = arith.cmpi sge, %455, %456 : vector<8x64xi32>
    %cst_152 = arith.constant 1.66666663 : f32
    %458 = vector.broadcast %cst_152 : f32 to vector<8x64xf32>
    %459 = arith.mulf %438, %458 : vector<8x64xf32>
    %cst_153 = arith.constant 0.000000e+00 : f32
    %460 = vector.broadcast %cst_153 : f32 to vector<8x64xf32>
    %461 = arith.select %457, %459, %460 : vector<8x64xi1>, vector<8x64xf32>
    %462 = arith.addf %1, %461 : vector<8x64xf32>
    %c0_154 = arith.constant 0 : index
    %c0_155 = arith.constant 0 : index
    %463 = vector.load %arg7[%c0_154, %c0_155] : memref<1x64xf32, #tpu.memory_space<vmem>>, vector<1x64xf32>
    %c0_156 = arith.constant 0 : index
    %c0_157 = arith.constant 0 : index
    %464 = vector.load %arg8[%c0_156, %c0_157] : memref<1x64xf32, #tpu.memory_space<vmem>>, vector<1x64xf32>
    %cst_158 = arith.constant dense<0.000000e+00> : vector<8xf32>
    %465 = vector.multi_reduction <add>, %462, %cst_158 [1] : vector<8x64xf32> to vector<8xf32>
    %466 = vector.shape_cast %465 : vector<8xf32> to vector<8x1xf32>
    %467 = arith.mulf %462, %462 : vector<8x64xf32>
    %cst_159 = arith.constant dense<0.000000e+00> : vector<8xf32>
    %468 = vector.multi_reduction <add>, %467, %cst_159 [1] : vector<8x64xf32> to vector<8xf32>
    %469 = vector.shape_cast %468 : vector<8xf32> to vector<8x1xf32>
    %cst_160 = arith.constant 1.562500e-02 : f32
    %470 = vector.broadcast %cst_160 : f32 to vector<8x1xf32>
    %471 = arith.mulf %466, %470 : vector<8x1xf32>
    %cst_161 = arith.constant 1.562500e-02 : f32
    %472 = vector.broadcast %cst_161 : f32 to vector<8x1xf32>
    %473 = arith.mulf %469, %472 : vector<8x1xf32>
    %474 = arith.mulf %471, %471 : vector<8x1xf32>
    %475 = arith.subf %473, %474 : vector<8x1xf32>
    %cst_162 = arith.constant 0.000000e+00 : f32
    %476 = vector.broadcast %cst_162 : f32 to vector<8x1xf32>
    %477 = arith.maximumf %475, %476 : vector<8x1xf32>
    %478 = vector.broadcast %471 : vector<8x1xf32> to vector<8x64xf32>
    %479 = arith.subf %462, %478 : vector<8x64xf32>
    %cst_163 = arith.constant 9.99999974E-6 : f32
    %480 = vector.broadcast %cst_163 : f32 to vector<8x1xf32>
    %481 = arith.addf %477, %480 : vector<8x1xf32>
    %482 = math.rsqrt %481 : vector<8x1xf32>
    %483 = vector.broadcast %482 : vector<8x1xf32> to vector<8x64xf32>
    %484 = arith.mulf %479, %483 : vector<8x64xf32>
    %485 = vector.broadcast %463 : vector<1x64xf32> to vector<8x64xf32>
    %486 = arith.mulf %484, %485 : vector<8x64xf32>
    %487 = vector.broadcast %464 : vector<1x64xf32> to vector<8x64xf32>
    %488 = arith.addf %486, %487 : vector<8x64xf32>
    %489 = arith.truncf %488 : vector<8x64xf32> to vector<8x64xbf16>
    %c0_164 = arith.constant 0 : index
    %c0_165 = arith.constant 0 : index
    %490 = vector.load %arg9[%c0_164, %c0_165] : memref<64x256xbf16, #tpu.memory_space<vmem>>, vector<64x256xbf16>
    %cst_166 = arith.constant dense<0.000000e+00> : vector<8x256xf32>
    %491 = tpu.matmul %489, %490, %cst_166 {dimension_numbers = #tpu.dot_dimension_numbers<[1], [0], [0], [1], [0, 0, 1, 1], [], []>} : vector<8x64xbf16>, vector<64x256xbf16>, vector<8x256xf32> -> vector<8x256xf32>
    %c0_167 = arith.constant 0 : index
    %c0_168 = arith.constant 0 : index
    %492 = vector.load %arg10[%c0_167, %c0_168] : memref<1x256xf32, #tpu.memory_space<vmem>>, vector<1x256xf32>
    %493 = vector.broadcast %492 : vector<1x256xf32> to vector<8x256xf32>
    %494 = arith.addf %491, %493 : vector<8x256xf32>
    %c0_169 = arith.constant 0 : index
    %c0_170 = arith.constant 0 : index
    %495 = vector.load %arg11[%c0_169, %c0_170] : memref<1x256xf32, #tpu.memory_space<vmem>>, vector<1x256xf32>
    %c0_171 = arith.constant 0 : index
    %c0_172 = arith.constant 0 : index
    %496 = vector.load %arg12[%c0_171, %c0_172] : memref<1x256xf32, #tpu.memory_space<vmem>>, vector<1x256xf32>
    %cst_173 = arith.constant dense<0.000000e+00> : vector<8xf32>
    %497 = vector.multi_reduction <add>, %494, %cst_173 [1] : vector<8x256xf32> to vector<8xf32>
    %498 = vector.shape_cast %497 : vector<8xf32> to vector<8x1xf32>
    %499 = arith.mulf %494, %494 : vector<8x256xf32>
    %cst_174 = arith.constant dense<0.000000e+00> : vector<8xf32>
    %500 = vector.multi_reduction <add>, %499, %cst_174 [1] : vector<8x256xf32> to vector<8xf32>
    %501 = vector.shape_cast %500 : vector<8xf32> to vector<8x1xf32>
    %cst_175 = arith.constant 3.906250e-03 : f32
    %502 = vector.broadcast %cst_175 : f32 to vector<8x1xf32>
    %503 = arith.mulf %498, %502 : vector<8x1xf32>
    %cst_176 = arith.constant 3.906250e-03 : f32
    %504 = vector.broadcast %cst_176 : f32 to vector<8x1xf32>
    %505 = arith.mulf %501, %504 : vector<8x1xf32>
    %506 = arith.mulf %503, %503 : vector<8x1xf32>
    %507 = arith.subf %505, %506 : vector<8x1xf32>
    %cst_177 = arith.constant 0.000000e+00 : f32
    %508 = vector.broadcast %cst_177 : f32 to vector<8x1xf32>
    %509 = arith.maximumf %507, %508 : vector<8x1xf32>
    %510 = vector.broadcast %503 : vector<8x1xf32> to vector<8x256xf32>
    %511 = arith.subf %494, %510 : vector<8x256xf32>
    %cst_178 = arith.constant 9.99999974E-6 : f32
    %512 = vector.broadcast %cst_178 : f32 to vector<8x1xf32>
    %513 = arith.addf %509, %512 : vector<8x1xf32>
    %514 = math.rsqrt %513 : vector<8x1xf32>
    %515 = vector.broadcast %514 : vector<8x1xf32> to vector<8x256xf32>
    %516 = arith.mulf %511, %515 : vector<8x256xf32>
    %517 = vector.broadcast %495 : vector<1x256xf32> to vector<8x256xf32>
    %518 = arith.mulf %516, %517 : vector<8x256xf32>
    %519 = vector.broadcast %496 : vector<1x256xf32> to vector<8x256xf32>
    %520 = arith.addf %518, %519 : vector<8x256xf32>
    %cst_179 = arith.constant 0.000000e+00 : f32
    %521 = vector.broadcast %cst_179 : f32 to vector<8x256xf32>
    %522 = arith.maximumf %520, %521 : vector<8x256xf32>
    %523 = arith.truncf %522 : vector<8x256xf32> to vector<8x256xbf16>
    %c0_180 = arith.constant 0 : index
    %c0_181 = arith.constant 0 : index
    %524 = vector.load %arg13[%c0_180, %c0_181] : memref<256x64xbf16, #tpu.memory_space<vmem>>, vector<256x64xbf16>
    %cst_182 = arith.constant dense<0.000000e+00> : vector<8x64xf32>
    %525 = tpu.matmul %523, %524, %cst_182 {dimension_numbers = #tpu.dot_dimension_numbers<[1], [0], [0], [1], [0, 0, 1, 1], [], []>} : vector<8x256xbf16>, vector<256x64xbf16>, vector<8x64xf32> -> vector<8x64xf32>
    %c0_183 = arith.constant 0 : index
    %c0_184 = arith.constant 0 : index
    %526 = vector.load %arg14[%c0_183, %c0_184] : memref<1x64xf32, #tpu.memory_space<vmem>>, vector<1x64xf32>
    %527 = vector.broadcast %526 : vector<1x64xf32> to vector<8x64xf32>
    %528 = arith.addf %525, %527 : vector<8x64xf32>
    %c3_i32 = arith.constant 3 : i32
    %529 = vector.broadcast %c3_i32 : i32 to vector<8x64xi32>
    %530 = arith.xori %432, %529 : vector<8x64xi32>
    %c16_i32_185 = arith.constant 16 : i32
    %531 = vector.broadcast %c16_i32_185 : i32 to vector<8x64xi32>
    %532 = arith.shrui %530, %531 : vector<8x64xi32>
    %533 = arith.xori %530, %532 : vector<8x64xi32>
    %c2146121005_i32_186 = arith.constant 2146121005 : i32
    %534 = vector.broadcast %c2146121005_i32_186 : i32 to vector<8x64xi32>
    %535 = arith.muli %533, %534 : vector<8x64xi32>
    %c15_i32_187 = arith.constant 15 : i32
    %536 = vector.broadcast %c15_i32_187 : i32 to vector<8x64xi32>
    %537 = arith.shrui %535, %536 : vector<8x64xi32>
    %538 = arith.xori %535, %537 : vector<8x64xi32>
    %c-2073254261_i32_188 = arith.constant -2073254261 : i32
    %539 = vector.broadcast %c-2073254261_i32_188 : i32 to vector<8x64xi32>
    %540 = arith.muli %538, %539 : vector<8x64xi32>
    %c16_i32_189 = arith.constant 16 : i32
    %541 = vector.broadcast %c16_i32_189 : i32 to vector<8x64xi32>
    %542 = arith.shrui %540, %541 : vector<8x64xi32>
    %543 = arith.xori %540, %542 : vector<8x64xi32>
    %c16777215_i32_190 = arith.constant 16777215 : i32
    %544 = vector.broadcast %c16777215_i32_190 : i32 to vector<8x64xi32>
    %545 = arith.andi %543, %544 : vector<8x64xi32>
    %c6710886_i32_191 = arith.constant 6710886 : i32
    %546 = vector.broadcast %c6710886_i32_191 : i32 to vector<8x64xi32>
    %547 = arith.cmpi sge, %545, %546 : vector<8x64xi32>
    %cst_192 = arith.constant 1.66666663 : f32
    %548 = vector.broadcast %cst_192 : f32 to vector<8x64xf32>
    %549 = arith.mulf %528, %548 : vector<8x64xf32>
    %cst_193 = arith.constant 0.000000e+00 : f32
    %550 = vector.broadcast %cst_193 : f32 to vector<8x64xf32>
    %551 = arith.select %547, %549, %550 : vector<8x64xi1>, vector<8x64xf32>
    %552 = arith.addf %462, %551 : vector<8x64xf32>
    %553 = vector.shape_cast %552 : vector<8x64xf32> to vector<1x8x64xf32>
    %c0_194 = arith.constant 0 : index
    %c0_195 = arith.constant 0 : index
    %c0_196 = arith.constant 0 : index
    %554 = vector.load %arg15[%c0_194, %c0_195, %c0_196] : memref<1x8x64xf32, #tpu.memory_space<vmem>>, vector<1x8x64xf32>
    tpu.vector_store %arg15[%c0_194, %c0_195, %c0_196], %553 {strides = array<i32>} : memref<1x8x64xf32, #tpu.memory_space<vmem>>, vector<1x8x64xf32>,
    return
  }
  func.func @transform_0(%arg0: i32) -> (i32, i32, i32) {
    %c0_i32 = arith.constant 0 : i32
    %c0_i32_0 = arith.constant 0 : i32
    %c0_i32_1 = arith.constant 0 : i32
    return %arg0, %c0_i32, %c0_i32_0 : i32, i32, i32
  }
  func.func @transform_1(%arg0: i32) -> (i32, i32) {
    %c0_i32 = arith.constant 0 : i32
    %c0_i32_0 = arith.constant 0 : i32
    %c0_i32_1 = arith.constant 0 : i32
    return %c0_i32, %c0_i32_0 : i32, i32
  }
  func.func @transform_2(%arg0: i32) -> (i32, i32) {
    %c0_i32 = arith.constant 0 : i32
    %c0_i32_0 = arith.constant 0 : i32
    %c0_i32_1 = arith.constant 0 : i32
    return %c0_i32, %c0_i32_0 : i32, i32
  }
  func.func @transform_3(%arg0: i32) -> (i32, i32) {
    %c0_i32 = arith.constant 0 : i32
    %c0_i32_0 = arith.constant 0 : i32
    %c0_i32_1 = arith.constant 0 : i32
    return %c0_i32, %c0_i32_0 : i32, i32
  }
  func.func @transform_4(%arg0: i32) -> (i32, i32) {
    %c0_i32 = arith.constant 0 : i32
    %c0_i32_0 = arith.constant 0 : i32
    %c0_i32_1 = arith.constant 0 : i32
    return %c0_i32, %c0_i32_0 : i32, i32
  }
  func.func @transform_5(%arg0: i32) -> (i32, i32) {
    %c0_i32 = arith.constant 0 : i32
    %c0_i32_0 = arith.constant 0 : i32
    %c0_i32_1 = arith.constant 0 : i32
    return %c0_i32, %c0_i32_0 : i32, i32
  }
  func.func @transform_6(%arg0: i32) -> (i32, i32) {
    %c0_i32 = arith.constant 0 : i32
    %c0_i32_0 = arith.constant 0 : i32
    %c0_i32_1 = arith.constant 0 : i32
    return %c0_i32, %c0_i32_0 : i32, i32
  }
  func.func @transform_7(%arg0: i32) -> (i32, i32) {
    %c0_i32 = arith.constant 0 : i32
    %c0_i32_0 = arith.constant 0 : i32
    %c0_i32_1 = arith.constant 0 : i32
    return %c0_i32, %c0_i32_0 : i32, i32
  }
  func.func @transform_8(%arg0: i32) -> (i32, i32) {
    %c0_i32 = arith.constant 0 : i32
    %c0_i32_0 = arith.constant 0 : i32
    %c0_i32_1 = arith.constant 0 : i32
    return %c0_i32, %c0_i32_0 : i32, i32
  }
  func.func @transform_9(%arg0: i32) -> (i32, i32) {
    %c0_i32 = arith.constant 0 : i32
    %c0_i32_0 = arith.constant 0 : i32
    %c0_i32_1 = arith.constant 0 : i32
    return %c0_i32, %c0_i32_0 : i32, i32
  }
  func.func @transform_10(%arg0: i32) -> (i32, i32) {
    %c0_i32 = arith.constant 0 : i32
    %c0_i32_0 = arith.constant 0 : i32
    %c0_i32_1 = arith.constant 0 : i32
    return %c0_i32, %c0_i32_0 : i32, i32
  }
  func.func @transform_11(%arg0: i32) -> (i32, i32) {
    %c0_i32 = arith.constant 0 : i32
    %c0_i32_0 = arith.constant 0 : i32
    %c0_i32_1 = arith.constant 0 : i32
    return %c0_i32, %c0_i32_0 : i32, i32
  }
  func.func @transform_12(%arg0: i32) -> (i32, i32) {
    %c0_i32 = arith.constant 0 : i32
    %c0_i32_0 = arith.constant 0 : i32
    %c0_i32_1 = arith.constant 0 : i32
    return %c0_i32, %c0_i32_0 : i32, i32
  }
  func.func @transform_13(%arg0: i32) -> (i32, i32) {
    %c0_i32 = arith.constant 0 : i32
    %c0_i32_0 = arith.constant 0 : i32
    %c0_i32_1 = arith.constant 0 : i32
    return %c0_i32, %c0_i32_0 : i32, i32
  }
  func.func @transform_14(%arg0: i32) -> (i32, i32, i32) {
    %c0_i32 = arith.constant 0 : i32
    %c0_i32_0 = arith.constant 0 : i32
    %c0_i32_1 = arith.constant 0 : i32
    return %arg0, %c0_i32, %c0_i32_0 : i32, i32, i32
  }
}

</mosaic_0001>

<llo_original>
// kernel: block_forward.1
$region0: #{block_forward.1}
  #allocation0 [shape = 'u32[]', space=smem, size = 0x4, offset = 0x4, fixed_abs, tag = 'smem constant byte address 0x4 - core index']
  #allocation1 [shape = 'u32[72,128]{1,0:T(1,128)}', space=vmem, size = 0x9000, scoped, tag = 'internal scratch']
  %s0 = inlined_call_operand.vmem [shape: f32[2,8,64], index: 0, kind: input, shape index: {}]
  %s1 = inlined_call_operand.vmem [shape: f32[1,64], index: 1, kind: input, shape index: {}]
  %s2 = inlined_call_operand.vmem [shape: f32[1,64], index: 2, kind: input, shape index: {}]
  %s3 = inlined_call_operand.vmem [shape: bf16[64,192], index: 3, kind: input, shape index: {}]
  %s4 = inlined_call_operand.vmem [shape: bf16[64,64], index: 4, kind: input, shape index: {}]
  %s5 = inlined_call_operand.vmem [shape: f32[1,64], index: 5, kind: input, shape index: {}]
  %s6 = inlined_call_operand.vmem [shape: f32[1,64], index: 6, kind: input, shape index: {}]
  %s7 = inlined_call_operand.vmem [shape: f32[1,64], index: 7, kind: input, shape index: {}]
  %s8 = inlined_call_operand.vmem [shape: bf16[64,256], index: 8, kind: input, shape index: {}]
  %s9 = inlined_call_operand.vmem [shape: f32[1,256], index: 9, kind: input, shape index: {}]
  %s10 = inlined_call_operand.vmem [shape: f32[1,256], index: 10, kind: input, shape index: {}]
  %s11 = inlined_call_operand.vmem [shape: f32[1,256], index: 11, kind: input, shape index: {}]
  %s12 = inlined_call_operand.vmem [shape: bf16[256,64], index: 12, kind: input, shape index: {}]
  %s13 = inlined_call_operand.vmem [shape: f32[1,64], index: 13, kind: input, shape index: {}]
  %s14 = inlined_call_operand.hbm [shape: f32[2,8,64], index: 14, kind: output, shape index: {}]
  %s15 = sld [smem:[#allocation0]]
  $region89: #{block_forward.1} parent=0
    _
  %s17 = ssub.s32 1, %s15
  %s18 = scalar_select 0, %s17, %s15
  $region1: #{block_forward.1} parent=0
    #allocation2 [shape = 'u8[8192]{0}', space=vmem, size = 0x2000, scoped, tag = 'output window, operand 0']
    #allocation3 [shape = 's32[2]{0}', space=sflag, size = 0x8, scoped, tag = 'scoped memory for block_forward.1']
    %19 = vsyncpa [#allocation3], 0
    %s20 = scalar_lea.sflag [#allocation3], 1
    %21 = vsyncpa %s20, 0
    loop: start=0, step=1, limit=4
    $region2: #{block_forward.1} parent=1 // loop_pre_header
      _
    $region3: #{block_forward.1} parent=1 // loop_header
      %s23 = sphi 0, %s27
      %p24 = scmp.ge.s32.totalorder %s23, 4
      %s33 = sphi 0, %s35
      %s36 = sphi 0, %s33
      %s37 = sphi 0, %s36
      %s53 = sphi 0, %s37
      %s57 = sphi 0, %s57
      %s59 = sphi 0, %s57
      %s60 = sphi 0, %s59
      %s74 = sphi 0, %s60
      %s78 = sphi 0, %s78
      %s80 = sphi 0, %s78
      %s81 = sphi 0, %s80
      %s95 = sphi 0, %s81
      %s99 = sphi 0, %s99
      %s101 = sphi 0, %s99
      %s102 = sphi 0, %s101
      %s116 = sphi 0, %s102
      %s120 = sphi 0, %s120
      %s122 = sphi 0, %s120
      %s123 = sphi 0, %s122
      %s137 = sphi 0, %s123
      %s141 = sphi 0, %s141
      %s143 = sphi 0, %s141
      %s144 = sphi 0, %s143
      %s158 = sphi 0, %s144
      %s162 = sphi 0, %s162
      %s164 = sphi 0, %s162
      %s165 = sphi 0, %s164
      %s179 = sphi 0, %s165
      %s183 = sphi 0, %s183
      %s185 = sphi 0, %s183
      %s186 = sphi 0, %s185
      %s200 = sphi 0, %s186
      %s204 = sphi 0, %s204
      %s206 = sphi 0, %s204
      %s207 = sphi 0, %s206
      %s221 = sphi 0, %s207
      %s225 = sphi 0, %s225
      %s227 = sphi 0, %s225
      %s228 = sphi 0, %s227
      %s242 = sphi 0, %s228
      %s246 = sphi 0, %s246
      %s248 = sphi 0, %s246
      %s249 = sphi 0, %s248
      %s263 = sphi 0, %s249
      %s267 = sphi 0, %s267
      %s269 = sphi 0, %s267
      %s270 = sphi 0, %s269
      %s284 = sphi 0, %s270
      %s288 = sphi 0, %s288
      %s290 = sphi 0, %s288
      %s291 = sphi 0, %s290
      %s305 = sphi 0, %s291
      %s309 = sphi 0, %s309
      %s311 = sphi 0, %s309
      %s312 = sphi 0, %s311
      %s326 = sphi 0, %s312
      %s332 = sphi 0, %s334
      %s335 = sphi 0, %s332
      %s336 = sphi 0, %s335
      %s352 = sphi 0, %s336
    $region4: #{block_forward.1} parent=1 // loop_header_branch
      %26 = sbr.rel (%p24) target = $region8
    $region5: #{block_forward.1} parent=1 // loop_body
      %s28 = ssub.s32 %s23, 1
      %s29 = ssub.s32 %s23, 2
      %s30 = sadd.s32 %s23, 1
      %s31 = ssub.s32 %s23, %s30
      %p32 = scmp.eq.s32.totalorder %s31, 0
      %s34 = sadd.s32 %s33, 1
      %s35 = scalar_select %p32, %s33, %s34
      %p38 = pneg %p32
      %p39 = scmp.eq.s32.totalorder %s23, 1
      %p40 = por %p38, %p39
      %p41 = scmp.ne.s32.totalorder %s33, %s36
      %p42 = scmp.eq.s32.totalorder %s23, 0
      %p43 = por %p41, %p42
      %p44 = scmp.ne.s32.totalorder %s33, %s36
      %p45 = scmp.eq.s32.totalorder %s28, 1
      %p46 = por %p44, %p45
      %p47 = scmp.ne.s32.totalorder %s36, %s37
      %p48 = scmp.eq.s32.totalorder %s28, 0
      %p49 = por %p47, %p48
      %p50 = scmp.ne.s32.totalorder %s36, %s37
      %p51 = scmp.eq.s32.totalorder %s29, 1
      %p52 = por %p50, %p51
      %p54 = scmp.ne.s32.totalorder %s37, %s53
      %p55 = scmp.eq.s32.totalorder %s29, 0
      %p56 = por %p54, %p55
      %s58 = sadd.s32 %s57, 1
      %p61 = scmp.eq.s32.totalorder %s23, 1
      %p62 = scmp.ne.s32.totalorder %s57, %s59
      %p63 = scmp.eq.s32.totalorder %s23, 0
      %p64 = por %p62, %p63
      %p65 = scmp.ne.s32.totalorder %s57, %s59
      %p66 = scmp.eq.s32.totalorder %s28, 1
      %p67 = por %p65, %p66
      %p68 = scmp.ne.s32.totalorder %s59, %s60
      %p69 = scmp.eq.s32.totalorder %s28, 0
      %p70 = por %p68, %p69
      %p71 = scmp.ne.s32.totalorder %s59, %s60
      %p72 = scmp.eq.s32.totalorder %s29, 1
      %p73 = por %p71, %p72
      %p75 = scmp.ne.s32.totalorder %s60, %s74
      %p76 = scmp.eq.s32.totalorder %s29, 0
      %p77 = por %p75, %p76
      %s79 = sadd.s32 %s78, 1
      %p82 = scmp.eq.s32.totalorder %s23, 1
      %p83 = scmp.ne.s32.totalorder %s78, %s80
      %p84 = scmp.eq.s32.totalorder %s23, 0
      %p85 = por %p83, %p84
      %p86 = scmp.ne.s32.totalorder %s78, %s80
      %p87 = scmp.eq.s32.totalorder %s28, 1
      %p88 = por %p86, %p87
      %p89 = scmp.ne.s32.totalorder %s80, %s81
      %p90 = scmp.eq.s32.totalorder %s28, 0
      %p91 = por %p89, %p90
      %p92 = scmp.ne.s32.totalorder %s80, %s81
      %p93 = scmp.eq.s32.totalorder %s29, 1
      %p94 = por %p92, %p93
      %p96 = scmp.ne.s32.totalorder %s81, %s95
      %p97 = scmp.eq.s32.totalorder %s29, 0
      %p98 = por %p96, %p97
      %s100 = sadd.s32 %s99, 1
      %p103 = scmp.eq.s32.totalorder %s23, 1
      %p104 = scmp.ne.s32.totalorder %s99, %s101
      %p105 = scmp.eq.s32.totalorder %s23, 0
      %p106 = por %p104, %p105
      %p107 = scmp.ne.s32.totalorder %s99, %s101
      %p108 = scmp.eq.s32.totalorder %s28, 1
      %p109 = por %p107, %p108
      %p110 = scmp.ne.s32.totalorder %s101, %s102
      %p111 = scmp.eq.s32.totalorder %s28, 0
      %p112 = por %p110, %p111
      %p113 = scmp.ne.s32.totalorder %s101, %s102
      %p114 = scmp.eq.s32.totalorder %s29, 1
      %p115 = por %p113, %p114
      %p117 = scmp.ne.s32.totalorder %s102, %s116
      %p118 = scmp.eq.s32.totalorder %s29, 0
      %p119 = por %p117, %p118
      %s121 = sadd.s32 %s120, 1
      %p124 = scmp.eq.s32.totalorder %s23, 1
      %p125 = scmp.ne.s32.totalorder %s120, %s122
      %p126 = scmp.eq.s32.totalorder %s23, 0
      %p127 = por %p125, %p126
      %p128 = scmp.ne.s32.totalorder %s120, %s122
      %p129 = scmp.eq.s32.totalorder %s28, 1
      %p130 = por %p128, %p129
      %p131 = scmp.ne.s32.totalorder %s122, %s123
      %p132 = scmp.eq.s32.totalorder %s28, 0
      %p133 = por %p131, %p132
      %p134 = scmp.ne.s32.totalorder %s122, %s123
      %p135 = scmp.eq.s32.totalorder %s29, 1
      %p136 = por %p134, %p135
      %p138 = scmp.ne.s32.totalorder %s123, %s137
      %p139 = scmp.eq.s32.totalorder %s29, 0
      %p140 = por %p138, %p139
      %s142 = sadd.s32 %s141, 1
      %p145 = scmp.eq.s32.totalorder %s23, 1
      %p146 = scmp.ne.s32.totalorder %s141, %s143
      %p147 = scmp.eq.s32.totalorder %s23, 0
      %p148 = por %p146, %p147
      %p149 = scmp.ne.s32.totalorder %s141, %s143
      %p150 = scmp.eq.s32.totalorder %s28, 1
      %p151 = por %p149, %p150
      %p152 = scmp.ne.s32.totalorder %s143, %s144
      %p153 = scmp.eq.s32.totalorder %s28, 0
      %p154 = por %p152, %p153
      %p155 = scmp.ne.s32.totalorder %s143, %s144
      %p156 = scmp.eq.s32.totalorder %s29, 1
      %p157 = por %p155, %p156
      %p159 = scmp.ne.s32.totalorder %s144, %s158
      %p160 = scmp.eq.s32.totalorder %s29, 0
      %p161 = por %p159, %p160
      %s163 = sadd.s32 %s162, 1
      %p166 = scmp.eq.s32.totalorder %s23, 1
      %p167 = scmp.ne.s32.totalorder %s162, %s164
      %p168 = scmp.eq.s32.totalorder %s23, 0
      %p169 = por %p167, %p168
      %p170 = scmp.ne.s32.totalorder %s162, %s164
      %p171 = scmp.eq.s32.totalorder %s28, 1
      %p172 = por %p170, %p171
      %p173 = scmp.ne.s32.totalorder %s164, %s165
      %p174 = scmp.eq.s32.totalorder %s28, 0
      %p175 = por %p173, %p174
      %p176 = scmp.ne.s32.totalorder %s164, %s165
      %p177 = scmp.eq.s32.totalorder %s29, 1
      %p178 = por %p176, %p177
      %p180 = scmp.ne.s32.totalorder %s165, %s179
      %p181 = scmp.eq.s32.totalorder %s29, 0
      %p182 = por %p180, %p181
      %s184 = sadd.s32 %s183, 1
      %p187 = scmp.eq.s32.totalorder %s23, 1
      %p188 = scmp.ne.s32.totalorder %s183, %s185
      %p189 = scmp.eq.s32.totalorder %s23, 0
      %p190 = por %p188, %p189
      %p191 = scmp.ne.s32.totalorder %s183, %s185
      %p192 = scmp.eq.s32.totalorder %s28, 1
      %p193 = por %p191, %p192
      %p194 = scmp.ne.s32.totalorder %s185, %s186
      %p195 = scmp.eq.s32.totalorder %s28, 0
      %p196 = por %p194, %p195
      %p197 = scmp.ne.s32.totalorder %s185, %s186
      %p198 = scmp.eq.s32.totalorder %s29, 1
      %p199 = por %p197, %p198
      %p201 = scmp.ne.s32.totalorder %s186, %s200
      %p202 = scmp.eq.s32.totalorder %s29, 0
      %p203 = por %p201, %p202
      %s205 = sadd.s32 %s204, 1
      %p208 = scmp.eq.s32.totalorder %s23, 1
      %p209 = scmp.ne.s32.totalorder %s204, %s206
      %p210 = scmp.eq.s32.totalorder %s23, 0
      %p211 = por %p209, %p210
      %p212 = scmp.ne.s32.totalorder %s204, %s206
      %p213 = scmp.eq.s32.totalorder %s28, 1
      %p214 = por %p212, %p213
      %p215 = scmp.ne.s32.totalorder %s206, %s207
      %p216 = scmp.eq.s32.totalorder %s28, 0
      %p217 = por %p215, %p216
      %p218 = scmp.ne.s32.totalorder %s206, %s207
      %p219 = scmp.eq.s32.totalorder %s29, 1
      %p220 = por %p218, %p219
      %p222 = scmp.ne.s32.totalorder %s207, %s221
      %p223 = scmp.eq.s32.totalorder %s29, 0
      %p224 = por %p222, %p223
      %s226 = sadd.s32 %s225, 1
      %p229 = scmp.eq.s32.totalorder %s23, 1
      %p230 = scmp.ne.s32.totalorder %s225, %s227
      %p231 = scmp.eq.s32.totalorder %s23, 0
      %p232 = por %p230, %p231
      %p233 = scmp.ne.s32.totalorder %s225, %s227
      %p234 = scmp.eq.s32.totalorder %s28, 1
      %p235 = por %p233, %p234
      %p236 = scmp.ne.s32.totalorder %s227, %s228
      %p237 = scmp.eq.s32.totalorder %s28, 0
      %p238 = por %p236, %p237
      %p239 = scmp.ne.s32.totalorder %s227, %s228
      %p240 = scmp.eq.s32.totalorder %s29, 1
      %p241 = por %p239, %p240
      %p243 = scmp.ne.s32.totalorder %s228, %s242
      %p244 = scmp.eq.s32.totalorder %s29, 0
      %p245 = por %p243, %p244
      %s247 = sadd.s32 %s246, 1
      %p250 = scmp.eq.s32.totalorder %s23, 1
      %p251 = scmp.ne.s32.totalorder %s246, %s248
      %p252 = scmp.eq.s32.totalorder %s23, 0
      %p253 = por %p251, %p252
      %p254 = scmp.ne.s32.totalorder %s246, %s248
      %p255 = scmp.eq.s32.totalorder %s28, 1
      %p256 = por %p254, %p255
      %p257 = scmp.ne.s32.totalorder %s248, %s249
      %p258 = scmp.eq.s32.totalorder %s28, 0
      %p259 = por %p257, %p258
      %p260 = scmp.ne.s32.totalorder %s248, %s249
      %p261 = scmp.eq.s32.totalorder %s29, 1
      %p262 = por %p260, %p261
      %p264 = scmp.ne.s32.totalorder %s249, %s263
      %p265 = scmp.eq.s32.totalorder %s29, 0
      %p266 = por %p264, %p265
      %s268 = sadd.s32 %s267, 1
      %p271 = scmp.eq.s32.totalorder %s23, 1
      %p272 = scmp.ne.s32.totalorder %s267, %s269
      %p273 = scmp.eq.s32.totalorder %s23, 0
      %p274 = por %p272, %p273
      %p275 = scmp.ne.s32.totalorder %s267, %s269
      %p276 = scmp.eq.s32.totalorder %s28, 1
      %p277 = por %p275, %p276
      %p278 = scmp.ne.s32.totalorder %s269, %s270
      %p279 = scmp.eq.s32.totalorder %s28, 0
      %p280 = por %p278, %p279
      %p281 = scmp.ne.s32.totalorder %s269, %s270
      %p282 = scmp.eq.s32.totalorder %s29, 1
      %p283 = por %p281, %p282
      %p285 = scmp.ne.s32.totalorder %s270, %s284
      %p286 = scmp.eq.s32.totalorder %s29, 0
      %p287 = por %p285, %p286
      %s289 = sadd.s32 %s288, 1
      %p292 = scmp.eq.s32.totalorder %s23, 1
      %p293 = scmp.ne.s32.totalorder %s288, %s290
      %p294 = scmp.eq.s32.totalorder %s23, 0
      %p295 = por %p293, %p294
      %p296 = scmp.ne.s32.totalorder %s288, %s290
      %p297 = scmp.eq.s32.totalorder %s28, 1
      %p298 = por %p296, %p297
      %p299 = scmp.ne.s32.totalorder %s290, %s291
      %p300 = scmp.eq.s32.totalorder %s28, 0
      %p301 = por %p299, %p300
      %p302 = scmp.ne.s32.totalorder %s290, %s291
      %p303 = scmp.eq.s32.totalorder %s29, 1
      %p304 = por %p302, %p303
      %p306 = scmp.ne.s32.totalorder %s291, %s305
      %p307 = scmp.eq.s32.totalorder %s29, 0
      %p308 = por %p306, %p307
      %s310 = sadd.s32 %s309, 1
      %p313 = scmp.eq.s32.totalorder %s23, 1
      %p314 = scmp.ne.s32.totalorder %s309, %s311
      %p315 = scmp.eq.s32.totalorder %s23, 0
      %p316 = por %p314, %p315
      %p317 = scmp.ne.s32.totalorder %s309, %s311
      %p318 = scmp.eq.s32.totalorder %s28, 1
      %p319 = por %p317, %p318
      %p320 = scmp.ne.s32.totalorder %s311, %s312
      %p321 = scmp.eq.s32.totalorder %s28, 0
      %p322 = por %p320, %p321
      %p323 = scmp.ne.s32.totalorder %s311, %s312
      %p324 = scmp.eq.s32.totalorder %s29, 1
      %p325 = por %p323, %p324
      %p327 = scmp.ne.s32.totalorder %s312, %s326
      %p328 = scmp.eq.s32.totalorder %s29, 0
      %p329 = por %p327, %p328
      %s330 = ssub.s32 %s23, %s30
      %p331 = scmp.eq.s32.totalorder %s330, 0
      %s333 = sadd.s32 %s332, 1
      %s334 = scalar_select %p331, %s332, %s333
      %p337 = pneg %p331
      %p338 = scmp.eq.s32.totalorder %s23, 1
      %p339 = por %p337, %p338
      %p340 = scmp.ne.s32.totalorder %s332, %s335
      %p341 = scmp.eq.s32.totalorder %s23, 0
      %p342 = por %p340, %p341
      %p343 = scmp.ne.s32.totalorder %s332, %s335
      %p344 = scmp.eq.s32.totalorder %s28, 1
      %p345 = por %p343, %p344
      %p346 = scmp.ne.s32.totalorder %s335, %s336
      %p347 = scmp.eq.s32.totalorder %s28, 0
      %p348 = por %p346, %p347
      %p349 = scmp.ne.s32.totalorder %s335, %s336
      %p350 = scmp.eq.s32.totalorder %s29, 1
      %p351 = por %p349, %p350
      %p353 = scmp.ne.s32.totalorder %s336, %s352
      %p354 = scmp.eq.s32.totalorder %s29, 0
      %p355 = por %p353, %p354
      %p356 = scmp.le.s32.totalorder 1, %s23
      %p357 = scmp.lt.s32.totalorder %s23, 3
      %p358 = pnand %p356, %p357
      %p359 = pneg %p358
      // Predicated region
      $region9: #{block_forward.1} parent=5 // pred_check
        _
      $region10: #{block_forward.1} parent=5 // pred_check_branch
        %361 = sbr.rel (%p358) target = $region12
      $region11: #{block_forward.1} parent=5 // pred_region
        %s362 = ssub.s32 %s23, 1
        // Predicated region
        $region13: #{block_forward.1} parent=11 // pred_check
          %p363 = pneg %p70
        $region14: #{block_forward.1} parent=11 // pred_check_branch
          %365 = sbr.rel (%p363) target = $region16
        $region15: #{block_forward.1} parent=11 // pred_region
          _
        $region16: #{block_forward.1} parent=11 // pred_fallthru
          _
        // Predicated region
        $region17: #{block_forward.1} parent=11 // pred_check
          %p366 = pneg %p91
        $region18: #{block_forward.1} parent=11 // pred_check_branch
          %368 = sbr.rel (%p366) target = $region20
        $region19: #{block_forward.1} parent=11 // pred_region
          _
        $region20: #{block_forward.1} parent=11 // pred_fallthru
          _
        // Predicated region
        $region21: #{block_forward.1} parent=11 // pred_check
          %p369 = pneg %p112
        $region22: #{block_forward.1} parent=11 // pred_check_branch
          %371 = sbr.rel (%p369) target = $region24
        $region23: #{block_forward.1} parent=11 // pred_region
          _
        $region24: #{block_forward.1} parent=11 // pred_fallthru
          _
        // Predicated region
        $region25: #{block_forward.1} parent=11 // pred_check
          %p372 = pneg %p133
        $region26: #{block_forward.1} parent=11 // pred_check_branch
          %374 = sbr.rel (%p372) target = $region28
        $region27: #{block_forward.1} parent=11 // pred_region
          _
        $region28: #{block_forward.1} parent=11 // pred_fallthru
          _
        // Predicated region
        $region29: #{block_forward.1} parent=11 // pred_check
          %p375 = pneg %p154
        $region30: #{block_forward.1} parent=11 // pred_check_branch
          %377 = sbr.rel (%p375) target = $region32
        $region31: #{block_forward.1} parent=11 // pred_region
          _
        $region32: #{block_forward.1} parent=11 // pred_fallthru
          _
        // Predicated region
        $region33: #{block_forward.1} parent=11 // pred_check
          %p378 = pneg %p175
        $region34: #{block_forward.1} parent=11 // pred_check_branch
          %380 = sbr.rel (%p378) target = $region36
        $region35: #{block_forward.1} parent=11 // pred_region
          _
        $region36: #{block_forward.1} parent=11 // pred_fallthru
          _
        // Predicated region
        $region37: #{block_forward.1} parent=11 // pred_check
          %p381 = pneg %p196
        $region38: #{block_forward.1} parent=11 // pred_check_branch
          %383 = sbr.rel (%p381) target = $region40
        $region39: #{block_forward.1} parent=11 // pred_region
          _
        $region40: #{block_forward.1} parent=11 // pred_fallthru
          _
        // Predicated region
        $region41: #{block_forward.1} parent=11 // pred_check
          %p384 = pneg %p217
        $region42: #{block_forward.1} parent=11 // pred_check_branch
          %386 = sbr.rel (%p384) target = $region44
        $region43: #{block_forward.1} parent=11 // pred_region
          _
        $region44: #{block_forward.1} parent=11 // pred_fallthru
          _
        // Predicated region
        $region45: #{block_forward.1} parent=11 // pred_check
          %p387 = pneg %p238
        $region46: #{block_forward.1} parent=11 // pred_check_branch
          %389 = sbr.rel (%p387) target = $region48
        $region47: #{block_forward.1} parent=11 // pred_region
          _
        $region48: #{block_forward.1} parent=11 // pred_fallthru
          _
        // Predicated region
        $region49: #{block_forward.1} parent=11 // pred_check
          %p390 = pneg %p259
        $region50: #{block_forward.1} parent=11 // pred_check_branch
          %392 = sbr.rel (%p390) target = $region52
        $region51: #{block_forward.1} parent=11 // pred_region
          _
        $region52: #{block_forward.1} parent=11 // pred_fallthru
          _
        // Predicated region
        $region53: #{block_forward.1} parent=11 // pred_check
          %p393 = pneg %p280
        $region54: #{block_forward.1} parent=11 // pred_check_branch
          %395 = sbr.rel (%p393) target = $region56
        $region55: #{block_forward.1} parent=11 // pred_region
          _
        $region56: #{block_forward.1} parent=11 // pred_fallthru
          _
        // Predicated region
        $region57: #{block_forward.1} parent=11 // pred_check
          %p396 = pneg %p301
        $region58: #{block_forward.1} parent=11 // pred_check_branch
          %398 = sbr.rel (%p396) target = $region60
        $region59: #{block_forward.1} parent=11 // pred_region
          _
        $region60: #{block_forward.1} parent=11 // pred_fallthru
          _
        // Predicated region
        $region61: #{block_forward.1} parent=11 // pred_check
          %p399 = pneg %p322
        $region62: #{block_forward.1} parent=11 // pred_check_branch
          %401 = sbr.rel (%p399) target = $region64
        $region63: #{block_forward.1} parent=11 // pred_region
          _
        $region64: #{block_forward.1} parent=11 // pred_fallthru
          _
      $region12: #{block_forward.1} parent=5 // pred_fallthru
        _
      %p402 = scmp.lt.s32.totalorder %s23, 2
      // Predicated region
      $region65: #{block_forward.1} parent=5 // pred_check
        %p403 = pneg %p402
      $region66: #{block_forward.1} parent=5 // pred_check_branch
        %405 = sbr.rel (%p403) target = $region68
      $region67: #{block_forward.1} parent=5 // pred_region
        // Predicated region
        $region69: #{block_forward.1} parent=67 // pred_check
          %p406 = pneg %p43
        $region70: #{block_forward.1} parent=67 // pred_check_branch
          %408 = sbr.rel (%p406) target = $region72
        $region71: #{block_forward.1} parent=67 // pred_region
          %p409 = scmp.lt.s32.totalorder %s23, 1
          %s410 = scalar_select %p409, %s23, 1
          %s411 = smul.addr %s410, 8
          %s412 = scalar_lea.vmem %s0, %s411
        $region72: #{block_forward.1} parent=67 // pred_fallthru
          _
      $region68: #{block_forward.1} parent=5 // pred_fallthru
        _
      %p413 = scmp.le.s32.totalorder 1, %s23
      %p414 = scmp.lt.s32.totalorder %s23, 3
      %p415 = pnand %p413, %p414
      %p416 = pneg %p415
      // Predicated region
      $region73: #{block_forward.1} parent=5 // pred_check
        _
      $region74: #{block_forward.1} parent=5 // pred_check_branch
        %418 = sbr.rel (%p415) target = $region76
      $region75: #{block_forward.1} parent=5 // pred_region
        %s419 = ssub.s32 %s23, 1
        %p420 = scmp.lt.s32.totalorder %s28, 1
        %s421 = scalar_select %p420, %s28, 1
        %s422 = smul.addr %s421, 8
        %s423 = scalar_lea.vmem %s0, %s422
        %p424 = pneg %p49
        %p425 = pneg %p46
        %p426 = pneg %p70
        %p427 = pneg %p67
        %p428 = pneg %p91
        %p429 = pneg %p88
        %p430 = pneg %p112
        %p431 = pneg %p109
        %p432 = pneg %p133
        %p433 = pneg %p130
        %p434 = pneg %p154
        %p435 = pneg %p151
        %p436 = pneg %p175
        %p437 = pneg %p172
        %p438 = pneg %p196
        %p439 = pneg %p193
        %p440 = pneg %p217
        %p441 = pneg %p214
        %p442 = pneg %p238
        %p443 = pneg %p235
        %p444 = pneg %p259
        %p445 = pneg %p256
        %p446 = pneg %p280
        %p447 = pneg %p277
        %p448 = pneg %p301
        %p449 = pneg %p298
        %p450 = pneg %p322
        %p451 = pneg %p319
        %p452 = pneg %p348
        %p453 = pneg %p345
        %s454 = sand.u32 %s335, 1
        %s455 = scalar_lea.sflag [#allocation3], %s454
        %s456 = sand.u32 %s335, 1
        %s457 = smul.addr %s456, 8
        %s458 = scalar_lea.vmem [#allocation2], %s457
        %p459 = scmp.lt.s32.totalorder %s28, 1
        %s460 = scalar_select %p459, %s28, 1
        %s461 = smul.addr %s460, 8
        %s462 = scalar_lea.vmem %s0, %s461
        %v464 = vld [vmem:[%s462] sm:$0xff]
        %v465 = vld [vmem:[%s1] sm:$0x1]
        %v466 = vld [vmem:[%s2] sm:$0x1]
        %vm467 = vcmask 523264
        %v468 = vsel %vm467, %v464, 0.0
        %469 = vadd.xlane.f32.xlu0 %v468
        %v470 = vpop.xlane.xlu0 %469
        %v471 = vmul.f32 %v464, %v464
        %v472 = vsel %vm467, %v471, 0.0
        %473 = vadd.xlane.f32.xlu0 %v472
        %v474 = vpop.xlane.xlu0 %473
        %v475 = vmul.f32 %v470, 0.015625
        %v476 = vmul.f32 %v474, 0.015625
        %v477 = vmul.f32 %v475, %v475
        %v478 = vsub.f32 %v476, %v477
        %v479 = vmax.f32 %v478, 0.0
        %v480 = vsub.f32 %v464, %v475
        %v481 = vadd.f32 %v479, 1e-05
        %v482 = vrsqrt.pop %v481
        %v483 = vmul.f32 %v482, %v481
        %v484 = vmul.f32 %v483, %v482
        %v485 = vmul.f32 0.5, %v484
        %v486 = vsub.f32 1.5, %v485
        %v487 = vmul.f32 %v482, %v486
        %vm488 = vweird.f32 %v481
        %vm489 = vweird.f32 %v482
        %vm490 = vmor %vm488, %vm489
        %v491 = vsel %vm490, %v482, %v487
        %v492 = vmul.f32 %v480, %v491
        %v494 = vperm.slane %v465, 0
        %v496 = vmul.f32 %v492, %v494
        %v498 = vperm.slane %v466, 0
        %v500 = vadd.f32 %v496, %v498
        %v501 = vpack.c.bf16 %v500, %v500
        %v502 = vld [vmem:[%s3] sm:$0xff]
        %v503 = vld [vmem:[%s3 + $0x8] sm:$0xff]
        %v504 = vld [vmem:[%s3 + $0x10] sm:$0xff]
        %v505 = vld [vmem:[%s3 + $0x18] sm:$0xff]
        %v506 = vld [vmem:[%s3 + $0x20] sm:$0xff]
        %v507 = vld [vmem:[%s3 + $0x28] sm:$0xff]
        %v508 = vld [vmem:[%s3 + $0x30] sm:$0xff]
        %v509 = vld [vmem:[%s3 + $0x38] sm:$0xff]
        %v518 = vunpack.c.l.b16 %v502
        %v519 = vunpack.c.h.b16 %v502
        %v520 = vunpack.c.l.b16 %v503
        %v521 = vunpack.c.h.b16 %v503
        %v522 = vunpack.c.l.b16 %v504
        %v523 = vunpack.c.h.b16 %v504
        %v524 = vunpack.c.l.b16 %v505
        %v525 = vunpack.c.h.b16 %v505
        %v526 = vunpack.c.l.b16 %v506
        %v527 = vunpack.c.h.b16 %v506
        %v528 = vunpack.c.l.b16 %v507
        %v529 = vunpack.c.h.b16 %v507
        %v530 = vunpack.c.l.b16 %v508
        %v531 = vunpack.c.h.b16 %v508
        %v532 = vunpack.c.l.b16 %v509
        %v533 = vunpack.c.h.b16 %v509
        %v534 = vpack.c.b16 %v520, %v518
        %v535 = vpack.c.b16 %v521, %v519
        %v536 = vpack.c.b16 %v524, %v522
        %v537 = vpack.c.b16 %v525, %v523
        %v538 = vpack.c.b16 %v528, %v526
        %v539 = vpack.c.b16 %v529, %v527
        %v540 = vpack.c.b16 %v532, %v530
        %v541 = vpack.c.b16 %v533, %v531
        %v551 = vsel %vm467, %v501, 0
        %553 = vmatpush.bf16.msra.mxu0 0
        %554 = vmatpush.bf16.msra.mxu0 0
        %555 = vmatpush.bf16.msra.mxu0 0
        %556 = vmatpush.bf16.msra.mxu0 0
        %557 = vmatpush.bf16.msra.mxu0 %v540
        %558 = vmatpush.bf16.msra.mxu0 %v538
        %559 = vmatpush.bf16.msra.mxu0 %v536
        %560 = vmatpush.bf16.msra.mxu0 %v534
        %561 = vmatmul.bf16.gmra.mxu0 %v551
        %v562 = vpop.f32.mrf.mxu0
        %v563 = vadd.f32 0.0, %v562
        %v564 = vpop.f32.mrf.mxu0
        %565 = vdwg.mxu0
        %566 = vmatpush.bf16.msra.mxu0 0
        %567 = vmatpush.bf16.msra.mxu0 0
        %568 = vmatpush.bf16.msra.mxu0 0
        %569 = vmatpush.bf16.msra.mxu0 0
        %570 = vmatpush.bf16.msra.mxu0 %v541
        %571 = vmatpush.bf16.msra.mxu0 %v539
        %572 = vmatpush.bf16.msra.mxu0 %v537
        %573 = vmatpush.bf16.msra.mxu0 %v535
        %574 = vmatmul.bf16.gmra.mxu0 %v551
        %v575 = vpop.f32.mrf.mxu0
        %v576 = vadd.f32 0.0, %v575
        %v577 = vpop.f32.mrf.mxu0
        %578 = vdwg.mxu0
        %v579 = vlaneseq
        %v580 = vshrl.u32 %v579, 7
        %v581 = vlaneseq
        %v582 = vand.u32 %v581, 127
        %vm583 = vcmp.le.s32.totalorder %v582, %v580
        %v584 = vstv %s28
        %v585 = vmul.u32 %v584, 8
        %v586 = vmul.u32 %v585, 64
        %v587 = vmul.u32 %v580, 8
        %v588 = vadd.s32 %v586, %v587
        %v589 = vadd.s32 %v588, %v582
        %v590 = vpack.c.bf16 %v563, %v563
        %v591 = vpack.c.bf16 %v576, %v576
        %v593 = vunpack.c.l.b16 %v590
        %v594 = vpack.c.b16 %v593, %v593
        %595 = vrot.lane.b32.xlu0 %v594, 64
        %v596 = vpop.permute.xlu0 %595
        %vm597 = vcmask 64512
        %v599 = vsel %vm597, %v590, 0
        %v602 = vsel %vm597, %v596, 0
        %604 = vmatpush.bf16.xpose.msra.mxu0 0
        %605 = vmatpush.bf16.xpose.msra.mxu0 0
        %606 = vmatpush.bf16.xpose.msra.mxu0 0
        %607 = vmatpush.bf16.xpose.msra.mxu0 0
        %608 = vmatpush.bf16.xpose.msra.mxu0 0
        %609 = vmatpush.bf16.xpose.msra.mxu0 0
        %610 = vmatpush.bf16.xpose.msra.mxu0 0
        %611 = vmatpush.bf16.xpose.msra.mxu0 %v602
        %612 = vmatmul.bf16.gmra.mxu0 %v599
        %v613 = vpop.f32.mrf.mxu0
        %v614 = vadd.f32 0.0, %v613
        %v615 = vpop.f32.mrf.mxu0
        %616 = vdwg.mxu0
        %v617 = vmul.f32 %v614, 0.35355338
        %v618 = vsel %vm583, %v617, -1e+30
        %v619 = vsel %vm597, %v618, -inf
        %620 = vmax.xlane.f32.xlu0 %v619
        %v621 = vpop.xlane.xlu0 %620
        %v622 = vsub.f32 %v618, %v621
        %v623 = vmul.f32 %v622, 1.442695
        %v624 = vpow.pop %v623
        %v625 = vsel %vm597, %v624, 0.0
        %626 = vadd.xlane.f32.xlu0 %v625
        %v627 = vpop.xlane.xlu0 %626
        %v628 = vrcp.pop %v627
        %v629 = vmul.f32 %v627, %v628
        %v630 = vsub.f32 1.0, %v629
        %v631 = vmul.f32 %v628, %v630
        %v632 = vadd.f32 %v628, %v631
        %vm633 = vweird.f32 %v627
        %vm634 = vweird.f32 %v628
        %vm635 = vmor %vm633, %vm634
        %v636 = vsel %vm635, %v628, %v632
        %v637 = vand.u32 2147483647, %v627
        %vm638 = vcmp.eq.f32.partialorder %v637, 8.507059e+37
        %v639 = vand.u32 %v627, 2147483648
        %v640 = vor.u32 1.1754944e-38, %v639
        %v641 = vsel %vm638, %v640, %v636
        %v642 = vmul.f32 %v624, %v641
        %v643 = vxor.u32 %v589, 1
        %v644 = vshrl.u32 %v643, 16
        %v645 = vxor.u32 %v643, %v644
        %v646 = vmul.u32 %v645, 2146121005
        %v647 = vshrl.u32 %v646, 15
        %v648 = vxor.u32 %v646, %v647
        %v649 = vmul.u32 %v648, 2221713035
        %v650 = vshrl.u32 %v649, 16
        %v651 = vxor.u32 %v649, %v650
        %v652 = vand.u32 %v651, 16777215
        %vm653 = vcmp.ge.s32.totalorder %v652, 6710886
        %v654 = vmul.f32 %v642, 1.6666666
        %v655 = vsel %vm653, %v654, 0.0
        %v656 = vpack.c.bf16 %v655, %v655
        %v658 = vsel %vm597, %v656, 0
        %vm660 = vcmask 1043456
        %v662 = vsel %vm660, %v591, 0
        %664 = vmatpush.bf16.msra.mxu0 0
        %665 = vmatpush.bf16.msra.mxu0 0
        %666 = vmatpush.bf16.msra.mxu0 0
        %667 = vmatpush.bf16.msra.mxu0 0
        %668 = vmatpush.bf16.msra.mxu0 0
        %669 = vmatpush.bf16.msra.mxu0 0
        %670 = vmatpush.bf16.msra.mxu0 0
        %671 = vmatpush.bf16.msra.mxu0 %v662
        %672 = vmatmul.bf16.gmra.mxu0 %v658
        %v673 = vpop.f32.mrf.mxu0
        %v674 = vadd.f32 0.0, %v673
        %v675 = vpop.f32.mrf.mxu0
        %676 = vdwg.mxu0
        %677 = vrot.lane.b32.xlu0 %v594, 120
        %v678 = vpop.permute.xlu0 %677
        %679 = vrot.lane.b32.xlu0 %v594, 56
        %v680 = vpop.permute.xlu0 %679
        %v682 = vsel %vm597, %v678, 0
        %v685 = vsel %vm597, %v680, 0
        %687 = vmatpush.bf16.xpose.msra.mxu0 0
        %688 = vmatpush.bf16.xpose.msra.mxu0 0
        %689 = vmatpush.bf16.xpose.msra.mxu0 0
        %690 = vmatpush.bf16.xpose.msra.mxu0 0
        %691 = vmatpush.bf16.xpose.msra.mxu0 0
        %692 = vmatpush.bf16.xpose.msra.mxu0 0
        %693 = vmatpush.bf16.xpose.msra.mxu0 0
        %694 = vmatpush.bf16.xpose.msra.mxu0 %v685
        %695 = vmatmul.bf16.gmra.mxu0 %v682
        %v696 = vpop.f32.mrf.mxu0
        %v697 = vadd.f32 0.0, %v696
        %v698 = vpop.f32.mrf.mxu0
        %699 = vdwg.mxu0
        %v700 = vmul.f32 %v697, 0.35355338
        %v701 = vsel %vm583, %v700, -1e+30
        %v702 = vsel %vm597, %v701, -inf
        %703 = vmax.xlane.f32.xlu0 %v702
        %v704 = vpop.xlane.xlu0 %703
        %v705 = vsub.f32 %v701, %v704
        %v706 = vmul.f32 %v705, 1.442695
        %v707 = vpow.pop %v706
        %v708 = vsel %vm597, %v707, 0.0
        %709 = vadd.xlane.f32.xlu0 %v708
        %v710 = vpop.xlane.xlu0 %709
        %v711 = vrcp.pop %v710
        %v712 = vmul.f32 %v710, %v711
        %v713 = vsub.f32 1.0, %v712
        %v714 = vmul.f32 %v711, %v713
        %v715 = vadd.f32 %v711, %v714
        %vm716 = vweird.f32 %v710
        %vm717 = vweird.f32 %v711
        %vm718 = vmor %vm716, %vm717
        %v719 = vsel %vm718, %v711, %v715
        %v720 = vand.u32 2147483647, %v710
        %vm721 = vcmp.eq.f32.partialorder %v720, 8.507059e+37
        %v722 = vand.u32 %v710, 2147483648
        %v723 = vor.u32 1.1754944e-38, %v722
        %v724 = vsel %vm721, %v723, %v719
        %v725 = vmul.f32 %v707, %v724
        %v726 = vadd.s32 %v589, 64
        %v727 = vxor.u32 %v726, 1
        %v728 = vshrl.u32 %v727, 16
        %v729 = vxor.u32 %v727, %v728
        %v730 = vmul.u32 %v729, 2146121005
        %v731 = vshrl.u32 %v730, 15
        %v732 = vxor.u32 %v730, %v731
        %v733 = vmul.u32 %v732, 2221713035
        %v734 = vshrl.u32 %v733, 16
        %v735 = vxor.u32 %v733, %v734
        %v736 = vand.u32 %v735, 16777215
        %vm737 = vcmp.ge.s32.totalorder %v736, 6710886
        %v738 = vmul.f32 %v725, 1.6666666
        %v739 = vsel %vm737, %v738, 0.0
        %v740 = vpack.c.bf16 %v739, %v739
        %v742 = vunpack.c.l.b16 %v591
        %v743 = vpack.c.b16 %v742, %v742
        %744 = vrot.lane.b32.xlu0 %v743, 120
        %v745 = vpop.permute.xlu0 %744
        %v747 = vsel %vm597, %v740, 0
        %v750 = vsel %vm660, %v745, 0
        %752 = vmatpush.bf16.msra.mxu0 0
        %753 = vmatpush.bf16.msra.mxu0 0
        %754 = vmatpush.bf16.msra.mxu0 0
        %755 = vmatpush.bf16.msra.mxu0 0
        %756 = vmatpush.bf16.msra.mxu0 0
        %757 = vmatpush.bf16.msra.mxu0 0
        %758 = vmatpush.bf16.msra.mxu0 0
        %759 = vmatpush.bf16.msra.mxu0 %v750
        %760 = vmatmul.bf16.gmra.mxu0 %v747
        %v761 = vpop.f32.mrf.mxu0
        %v762 = vadd.f32 0.0, %v761
        %v763 = vpop.f32.mrf.mxu0
        %764 = vdwg.mxu0
        %765 = vrot.lane.b32.xlu0 %v594, 112
        %v766 = vpop.permute.xlu0 %765
        %767 = vrot.lane.b32.xlu0 %v594, 48
        %v768 = vpop.permute.xlu0 %767
        %v770 = vsel %vm597, %v766, 0
        %v773 = vsel %vm597, %v768, 0
        %775 = vmatpush.bf16.xpose.msra.mxu0 0
        %776 = vmatpush.bf16.xpose.msra.mxu0 0
        %777 = vmatpush.bf16.xpose.msra.mxu0 0
        %778 = vmatpush.bf16.xpose.msra.mxu0 0
        %779 = vmatpush.bf16.xpose.msra.mxu0 0
        %780 = vmatpush.bf16.xpose.msra.mxu0 0
        %781 = vmatpush.bf16.xpose.msra.mxu0 0
        %782 = vmatpush.bf16.xpose.msra.mxu0 %v773
        %783 = vmatmul.bf16.gmra.mxu0 %v770
        %v784 = vpop.f32.mrf.mxu0
        %v785 = vadd.f32 0.0, %v784
        %v786 = vpop.f32.mrf.mxu0
        %787 = vdwg.mxu0
        %v788 = vmul.f32 %v785, 0.35355338
        %v789 = vsel %vm583, %v788, -1e+30
        %v790 = vsel %vm597, %v789, -inf
        %791 = vmax.xlane.f32.xlu0 %v790
        %v792 = vpop.xlane.xlu0 %791
        %v793 = vsub.f32 %v789, %v792
        %v794 = vmul.f32 %v793, 1.442695
        %v795 = vpow.pop %v794
        %v796 = vsel %vm597, %v795, 0.0
        %797 = vadd.xlane.f32.xlu0 %v796
        %v798 = vpop.xlane.xlu0 %797
        %v799 = vrcp.pop %v798
        %v800 = vmul.f32 %v798, %v799
        %v801 = vsub.f32 1.0, %v800
        %v802 = vmul.f32 %v799, %v801
        %v803 = vadd.f32 %v799, %v802
        %vm804 = vweird.f32 %v798
        %vm805 = vweird.f32 %v799
        %vm806 = vmor %vm804, %vm805
        %v807 = vsel %vm806, %v799, %v803
        %v808 = vand.u32 2147483647, %v798
        %vm809 = vcmp.eq.f32.partialorder %v808, 8.507059e+37
        %v810 = vand.u32 %v798, 2147483648
        %v811 = vor.u32 1.1754944e-38, %v810
        %v812 = vsel %vm809, %v811, %v807
        %v813 = vmul.f32 %v795, %v812
        %v814 = vadd.s32 %v589, 128
        %v815 = vxor.u32 %v814, 1
        %v816 = vshrl.u32 %v815, 16
        %v817 = vxor.u32 %v815, %v816
        %v818 = vmul.u32 %v817, 2146121005
        %v819 = vshrl.u32 %v818, 15
        %v820 = vxor.u32 %v818, %v819
        %v821 = vmul.u32 %v820, 2221713035
        %v822 = vshrl.u32 %v821, 16
        %v823 = vxor.u32 %v821, %v822
        %v824 = vand.u32 %v823, 16777215
        %vm825 = vcmp.ge.s32.totalorder %v824, 6710886
        %v826 = vmul.f32 %v813, 1.6666666
        %v827 = vsel %vm825, %v826, 0.0
        %v828 = vpack.c.bf16 %v827, %v827
        %829 = vrot.lane.b32.xlu0 %v743, 112
        %v830 = vpop.permute.xlu0 %829
        %v832 = vsel %vm597, %v828, 0
        %v835 = vsel %vm660, %v830, 0
        %837 = vmatpush.bf16.msra.mxu0 0
        %838 = vmatpush.bf16.msra.mxu0 0
        %839 = vmatpush.bf16.msra.mxu0 0
        %840 = vmatpush.bf16.msra.mxu0 0
        %841 = vmatpush.bf16.msra.mxu0 0
        %842 = vmatpush.bf16.msra.mxu0 0
        %843 = vmatpush.bf16.msra.mxu0 0
        %844 = vmatpush.bf16.msra.mxu0 %v835
        %845 = vmatmul.bf16.gmra.mxu0 %v832
        %v846 = vpop.f32.mrf.mxu0
        %v847 = vadd.f32 0.0, %v846
        %v848 = vpop.f32.mrf.mxu0
        %849 = vdwg.mxu0
        %850 = vrot.lane.b32.xlu0 %v594, 104
        %v851 = vpop.permute.xlu0 %850
        %852 = vrot.lane.b32.xlu0 %v594, 40
        %v853 = vpop.permute.xlu0 %852
        %v855 = vsel %vm597, %v851, 0
        %v858 = vsel %vm597, %v853, 0
        %860 = vmatpush.bf16.xpose.msra.mxu0 0
        %861 = vmatpush.bf16.xpose.msra.mxu0 0
        %862 = vmatpush.bf16.xpose.msra.mxu0 0
        %863 = vmatpush.bf16.xpose.msra.mxu0 0
        %864 = vmatpush.bf16.xpose.msra.mxu0 0
        %865 = vmatpush.bf16.xpose.msra.mxu0 0
        %866 = vmatpush.bf16.xpose.msra.mxu0 0
        %867 = vmatpush.bf16.xpose.msra.mxu0 %v858
        %868 = vmatmul.bf16.gmra.mxu0 %v855
        %v869 = vpop.f32.mrf.mxu0
        %v870 = vadd.f32 0.0, %v869
        %v871 = vpop.f32.mrf.mxu0
        %872 = vdwg.mxu0
        %v873 = vmul.f32 %v870, 0.35355338
        %v874 = vsel %vm583, %v873, -1e+30
        %v875 = vsel %vm597, %v874, -inf
        %876 = vmax.xlane.f32.xlu0 %v875
        %v877 = vpop.xlane.xlu0 %876
        %v878 = vsub.f32 %v874, %v877
        %v879 = vmul.f32 %v878, 1.442695
        %v880 = vpow.pop %v879
        %v881 = vsel %vm597, %v880, 0.0
        %882 = vadd.xlane.f32.xlu0 %v881
        %v883 = vpop.xlane.xlu0 %882
        %v884 = vrcp.pop %v883
        %v885 = vmul.f32 %v883, %v884
        %v886 = vsub.f32 1.0, %v885
        %v887 = vmul.f32 %v884, %v886
        %v888 = vadd.f32 %v884, %v887
        %vm889 = vweird.f32 %v883
        %vm890 = vweird.f32 %v884
        %vm891 = vmor %vm889, %vm890
        %v892 = vsel %vm891, %v884, %v888
        %v893 = vand.u32 2147483647, %v883
        %vm894 = vcmp.eq.f32.partialorder %v893, 8.507059e+37
        %v895 = vand.u32 %v883, 2147483648
        %v896 = vor.u32 1.1754944e-38, %v895
        %v897 = vsel %vm894, %v896, %v892
        %v898 = vmul.f32 %v880, %v897
        %v899 = vadd.s32 %v589, 192
        %v900 = vxor.u32 %v899, 1
        %v901 = vshrl.u32 %v900, 16
        %v902 = vxor.u32 %v900, %v901
        %v903 = vmul.u32 %v902, 2146121005
        %v904 = vshrl.u32 %v903, 15
        %v905 = vxor.u32 %v903, %v904
        %v906 = vmul.u32 %v905, 2221713035
        %v907 = vshrl.u32 %v906, 16
        %v908 = vxor.u32 %v906, %v907
        %v909 = vand.u32 %v908, 16777215
        %vm910 = vcmp.ge.s32.totalorder %v909, 6710886
        %v911 = vmul.f32 %v898, 1.6666666
        %v912 = vsel %vm910, %v911, 0.0
        %v913 = vpack.c.bf16 %v912, %v912
        %914 = vrot.lane.b32.xlu0 %v743, 104
        %v915 = vpop.permute.xlu0 %914
        %v917 = vsel %vm597, %v913, 0
        %v920 = vsel %vm660, %v915, 0
        %922 = vmatpush.bf16.msra.mxu0 0
        %923 = vmatpush.bf16.msra.mxu0 0
        %924 = vmatpush.bf16.msra.mxu0 0
        %925 = vmatpush.bf16.msra.mxu0 0
        %926 = vmatpush.bf16.msra.mxu0 0
        %927 = vmatpush.bf16.msra.mxu0 0
        %928 = vmatpush.bf16.msra.mxu0 0
        %929 = vmatpush.bf16.msra.mxu0 %v920
        %930 = vmatmul.bf16.gmra.mxu0 %v917
        %v931 = vpop.f32.mrf.mxu0
        %v932 = vadd.f32 0.0, %v931
        %v933 = vpop.f32.mrf.mxu0
        %934 = vdwg.mxu0
        %935 = vrot.lane.b32.xlu0 %v594, 96
        %v936 = vpop.permute.xlu0 %935
        %937 = vrot.lane.b32.xlu0 %v594, 32
        %v938 = vpop.permute.xlu0 %937
        %v940 = vsel %vm597, %v936, 0
        %v943 = vsel %vm597, %v938, 0
        %945 = vmatpush.bf16.xpose.msra.mxu0 0
        %946 = vmatpush.bf16.xpose.msra.mxu0 0
        %947 = vmatpush.bf16.xpose.msra.mxu0 0
        %948 = vmatpush.bf16.xpose.msra.mxu0 0
        %949 = vmatpush.bf16.xpose.msra.mxu0 0
        %950 = vmatpush.bf16.xpose.msra.mxu0 0
        %951 = vmatpush.bf16.xpose.msra.mxu0 0
        %952 = vmatpush.bf16.xpose.msra.mxu0 %v943
        %953 = vmatmul.bf16.gmra.mxu0 %v940
        %v954 = vpop.f32.mrf.mxu0
        %v955 = vadd.f32 0.0, %v954
        %v956 = vpop.f32.mrf.mxu0
        %957 = vdwg.mxu0
        %v958 = vmul.f32 %v955, 0.35355338
        %v959 = vsel %vm583, %v958, -1e+30
        %v960 = vsel %vm597, %v959, -inf
        %961 = vmax.xlane.f32.xlu0 %v960
        %v962 = vpop.xlane.xlu0 %961
        %v963 = vsub.f32 %v959, %v962
        %v964 = vmul.f32 %v963, 1.442695
        %v965 = vpow.pop %v964
        %v966 = vsel %vm597, %v965, 0.0
        %967 = vadd.xlane.f32.xlu0 %v966
        %v968 = vpop.xlane.xlu0 %967
        %v969 = vrcp.pop %v968
        %v970 = vmul.f32 %v968, %v969
        %v971 = vsub.f32 1.0, %v970
        %v972 = vmul.f32 %v969, %v971
        %v973 = vadd.f32 %v969, %v972
        %vm974 = vweird.f32 %v968
        %vm975 = vweird.f32 %v969
        %vm976 = vmor %vm974, %vm975
        %v977 = vsel %vm976, %v969, %v973
        %v978 = vand.u32 2147483647, %v968
        %vm979 = vcmp.eq.f32.partialorder %v978, 8.507059e+37
        %v980 = vand.u32 %v968, 2147483648
        %v981 = vor.u32 1.1754944e-38, %v980
        %v982 = vsel %vm979, %v981, %v977
        %v983 = vmul.f32 %v965, %v982
        %v984 = vadd.s32 %v589, 256
        %v985 = vxor.u32 %v984, 1
        %v986 = vshrl.u32 %v985, 16
        %v987 = vxor.u32 %v985, %v986
        %v988 = vmul.u32 %v987, 2146121005
        %v989 = vshrl.u32 %v988, 15
        %v990 = vxor.u32 %v988, %v989
        %v991 = vmul.u32 %v990, 2221713035
        %v992 = vshrl.u32 %v991, 16
        %v993 = vxor.u32 %v991, %v992
        %v994 = vand.u32 %v993, 16777215
        %vm995 = vcmp.ge.s32.totalorder %v994, 6710886
        %v996 = vmul.f32 %v983, 1.6666666
        %v997 = vsel %vm995, %v996, 0.0
        %v998 = vpack.c.bf16 %v997, %v997
        %999 = vrot.lane.b32.xlu0 %v743, 96
        %v1000 = vpop.permute.xlu0 %999
        %v1002 = vsel %vm597, %v998, 0
        %v1005 = vsel %vm660, %v1000, 0
        %1007 = vmatpush.bf16.msra.mxu0 0
        %1008 = vmatpush.bf16.msra.mxu0 0
        %1009 = vmatpush.bf16.msra.mxu0 0
        %1010 = vmatpush.bf16.msra.mxu0 0
        %1011 = vmatpush.bf16.msra.mxu0 0
        %1012 = vmatpush.bf16.msra.mxu0 0
        %1013 = vmatpush.bf16.msra.mxu0 0
        %1014 = vmatpush.bf16.msra.mxu0 %v1005
        %1015 = vmatmul.bf16.gmra.mxu0 %v1002
        %v1016 = vpop.f32.mrf.mxu0
        %v1017 = vadd.f32 0.0, %v1016
        %v1018 = vpop.f32.mrf.mxu0
        %1019 = vdwg.mxu0
        %1020 = vrot.lane.b32.xlu0 %v594, 88
        %v1021 = vpop.permute.xlu0 %1020
        %1022 = vrot.lane.b32.xlu0 %v594, 24
        %v1023 = vpop.permute.xlu0 %1022
        %v1025 = vsel %vm597, %v1021, 0
        %v1028 = vsel %vm597, %v1023, 0
        %1030 = vmatpush.bf16.xpose.msra.mxu0 0
        %1031 = vmatpush.bf16.xpose.msra.mxu0 0
        %1032 = vmatpush.bf16.xpose.msra.mxu0 0
        %1033 = vmatpush.bf16.xpose.msra.mxu0 0
        %1034 = vmatpush.bf16.xpose.msra.mxu0 0
        %1035 = vmatpush.bf16.xpose.msra.mxu0 0
        %1036 = vmatpush.bf16.xpose.msra.mxu0 0
        %1037 = vmatpush.bf16.xpose.msra.mxu0 %v1028
        %1038 = vmatmul.bf16.gmra.mxu0 %v1025
        %v1039 = vpop.f32.mrf.mxu0
        %v1040 = vadd.f32 0.0, %v1039
        %v1041 = vpop.f32.mrf.mxu0
        %1042 = vdwg.mxu0
        %v1043 = vmul.f32 %v1040, 0.35355338
        %v1044 = vsel %vm583, %v1043, -1e+30
        %v1045 = vsel %vm597, %v1044, -inf
        %1046 = vmax.xlane.f32.xlu0 %v1045
        %v1047 = vpop.xlane.xlu0 %1046
        %v1048 = vsub.f32 %v1044, %v1047
        %v1049 = vmul.f32 %v1048, 1.442695
        %v1050 = vpow.pop %v1049
        %v1051 = vsel %vm597, %v1050, 0.0
        %1052 = vadd.xlane.f32.xlu0 %v1051
        %v1053 = vpop.xlane.xlu0 %1052
        %v1054 = vrcp.pop %v1053
        %v1055 = vmul.f32 %v1053, %v1054
        %v1056 = vsub.f32 1.0, %v1055
        %v1057 = vmul.f32 %v1054, %v1056
        %v1058 = vadd.f32 %v1054, %v1057
        %vm1059 = vweird.f32 %v1053
        %vm1060 = vweird.f32 %v1054
        %vm1061 = vmor %vm1059, %vm1060
        %v1062 = vsel %vm1061, %v1054, %v1058
        %v1063 = vand.u32 2147483647, %v1053
        %vm1064 = vcmp.eq.f32.partialorder %v1063, 8.507059e+37
        %v1065 = vand.u32 %v1053, 2147483648
        %v1066 = vor.u32 1.1754944e-38, %v1065
        %v1067 = vsel %vm1064, %v1066, %v1062
        %v1068 = vmul.f32 %v1050, %v1067
        %v1069 = vadd.s32 %v589, 320
        %v1070 = vxor.u32 %v1069, 1
        %v1071 = vshrl.u32 %v1070, 16
        %v1072 = vxor.u32 %v1070, %v1071
        %v1073 = vmul.u32 %v1072, 2146121005
        %v1074 = vshrl.u32 %v1073, 15
        %v1075 = vxor.u32 %v1073, %v1074
        %v1076 = vmul.u32 %v1075, 2221713035
        %v1077 = vshrl.u32 %v1076, 16
        %v1078 = vxor.u32 %v1076, %v1077
        %v1079 = vand.u32 %v1078, 16777215
        %vm1080 = vcmp.ge.s32.totalorder %v1079, 6710886
        %v1081 = vmul.f32 %v1068, 1.6666666
        %v1082 = vsel %vm1080, %v1081, 0.0
        %v1083 = vpack.c.bf16 %v1082, %v1082
        %1084 = vrot.lane.b32.xlu0 %v743, 88
        %v1085 = vpop.permute.xlu0 %1084
        %v1087 = vsel %vm597, %v1083, 0
        %v1090 = vsel %vm660, %v1085, 0
        %1092 = vmatpush.bf16.msra.mxu0 0
        %1093 = vmatpush.bf16.msra.mxu0 0
        %1094 = vmatpush.bf16.msra.mxu0 0
        %1095 = vmatpush.bf16.msra.mxu0 0
        %1096 = vmatpush.bf16.msra.mxu0 0
        %1097 = vmatpush.bf16.msra.mxu0 0
        %1098 = vmatpush.bf16.msra.mxu0 0
        %1099 = vmatpush.bf16.msra.mxu0 %v1090
        %1100 = vmatmul.bf16.gmra.mxu0 %v1087
        %v1101 = vpop.f32.mrf.mxu0
        %v1102 = vadd.f32 0.0, %v1101
        %v1103 = vpop.f32.mrf.mxu0
        %1104 = vdwg.mxu0
        %1105 = vrot.lane.b32.xlu0 %v594, 80
        %v1106 = vpop.permute.xlu0 %1105
        %1107 = vrot.lane.b32.xlu0 %v594, 16
        %v1108 = vpop.permute.xlu0 %1107
        %v1110 = vsel %vm597, %v1106, 0
        %v1113 = vsel %vm597, %v1108, 0
        %1115 = vmatpush.bf16.xpose.msra.mxu0 0
        %1116 = vmatpush.bf16.xpose.msra.mxu0 0
        %1117 = vmatpush.bf16.xpose.msra.mxu0 0
        %1118 = vmatpush.bf16.xpose.msra.mxu0 0
        %1119 = vmatpush.bf16.xpose.msra.mxu0 0
        %1120 = vmatpush.bf16.xpose.msra.mxu0 0
        %1121 = vmatpush.bf16.xpose.msra.mxu0 0
        %1122 = vmatpush.bf16.xpose.msra.mxu0 %v1113
        %1123 = vmatmul.bf16.gmra.mxu0 %v1110
        %v1124 = vpop.f32.mrf.mxu0
        %v1125 = vadd.f32 0.0, %v1124
        %v1126 = vpop.f32.mrf.mxu0
        %1127 = vdwg.mxu0
        %v1128 = vmul.f32 %v1125, 0.35355338
        %v1129 = vsel %vm583, %v1128, -1e+30
        %v1130 = vsel %vm597, %v1129, -inf
        %1131 = vmax.xlane.f32.xlu0 %v1130
        %v1132 = vpop.xlane.xlu0 %1131
        %v1133 = vsub.f32 %v1129, %v1132
        %v1134 = vmul.f32 %v1133, 1.442695
        %v1135 = vpow.pop %v1134
        %v1136 = vsel %vm597, %v1135, 0.0
        %1137 = vadd.xlane.f32.xlu0 %v1136
        %v1138 = vpop.xlane.xlu0 %1137
        %v1139 = vrcp.pop %v1138
        %v1140 = vmul.f32 %v1138, %v1139
        %v1141 = vsub.f32 1.0, %v1140
        %v1142 = vmul.f32 %v1139, %v1141
        %v1143 = vadd.f32 %v1139, %v1142
        %vm1144 = vweird.f32 %v1138
        %vm1145 = vweird.f32 %v1139
        %vm1146 = vmor %vm1144, %vm1145
        %v1147 = vsel %vm1146, %v1139, %v1143
        %v1148 = vand.u32 2147483647, %v1138
        %vm1149 = vcmp.eq.f32.partialorder %v1148, 8.507059e+37
        %v1150 = vand.u32 %v1138, 2147483648
        %v1151 = vor.u32 1.1754944e-38, %v1150
        %v1152 = vsel %vm1149, %v1151, %v1147
        %v1153 = vmul.f32 %v1135, %v1152
        %v1154 = vadd.s32 %v589, 384
        %v1155 = vxor.u32 %v1154, 1
        %v1156 = vshrl.u32 %v1155, 16
        %v1157 = vxor.u32 %v1155, %v1156
        %v1158 = vmul.u32 %v1157, 2146121005
        %v1159 = vshrl.u32 %v1158, 15
        %v1160 = vxor.u32 %v1158, %v1159
        %v1161 = vmul.u32 %v1160, 2221713035
        %v1162 = vshrl.u32 %v1161, 16
        %v1163 = vxor.u32 %v1161, %v1162
        %v1164 = vand.u32 %v1163, 16777215
        %vm1165 = vcmp.ge.s32.totalorder %v1164, 6710886
        %v1166 = vmul.f32 %v1153, 1.6666666
        %v1167 = vsel %vm1165, %v1166, 0.0
        %v1168 = vpack.c.bf16 %v1167, %v1167
        %1169 = vrot.lane.b32.xlu0 %v743, 80
        %v1170 = vpop.permute.xlu0 %1169
        %v1172 = vsel %vm597, %v1168, 0
        %v1175 = vsel %vm660, %v1170, 0
        %1177 = vmatpush.bf16.msra.mxu0 0
        %1178 = vmatpush.bf16.msra.mxu0 0
        %1179 = vmatpush.bf16.msra.mxu0 0
        %1180 = vmatpush.bf16.msra.mxu0 0
        %1181 = vmatpush.bf16.msra.mxu0 0
        %1182 = vmatpush.bf16.msra.mxu0 0
        %1183 = vmatpush.bf16.msra.mxu0 0
        %1184 = vmatpush.bf16.msra.mxu0 %v1175
        %1185 = vmatmul.bf16.gmra.mxu0 %v1172
        %v1186 = vpop.f32.mrf.mxu0
        %v1187 = vadd.f32 0.0, %v1186
        %v1188 = vpop.f32.mrf.mxu0
        %1189 = vdwg.mxu0
        %1190 = vrot.lane.b32.xlu0 %v594, 72
        %v1191 = vpop.permute.xlu0 %1190
        %1192 = vrot.lane.b32.xlu0 %v594, 8
        %v1193 = vpop.permute.xlu0 %1192
        %v1195 = vsel %vm597, %v1191, 0
        %v1198 = vsel %vm597, %v1193, 0
        %1200 = vmatpush.bf16.xpose.msra.mxu0 0
        %1201 = vmatpush.bf16.xpose.msra.mxu0 0
        %1202 = vmatpush.bf16.xpose.msra.mxu0 0
        %1203 = vmatpush.bf16.xpose.msra.mxu0 0
        %1204 = vmatpush.bf16.xpose.msra.mxu0 0
        %1205 = vmatpush.bf16.xpose.msra.mxu0 0
        %1206 = vmatpush.bf16.xpose.msra.mxu0 0
        %1207 = vmatpush.bf16.xpose.msra.mxu0 %v1198
        %1208 = vmatmul.bf16.gmra.mxu0 %v1195
        %v1209 = vpop.f32.mrf.mxu0
        %v1210 = vadd.f32 0.0, %v1209
        %v1211 = vpop.f32.mrf.mxu0
        %1212 = vdwg.mxu0
        %v1213 = vmul.f32 %v1210, 0.35355338
        %v1214 = vsel %vm583, %v1213, -1e+30
        %v1215 = vsel %vm597, %v1214, -inf
        %1216 = vmax.xlane.f32.xlu0 %v1215
        %v1217 = vpop.xlane.xlu0 %1216
        %v1218 = vsub.f32 %v1214, %v1217
        %v1219 = vmul.f32 %v1218, 1.442695
        %v1220 = vpow.pop %v1219
        %v1221 = vsel %vm597, %v1220, 0.0
        %1222 = vadd.xlane.f32.xlu0 %v1221
        %v1223 = vpop.xlane.xlu0 %1222
        %v1224 = vrcp.pop %v1223
        %v1225 = vmul.f32 %v1223, %v1224
        %v1226 = vsub.f32 1.0, %v1225
        %v1227 = vmul.f32 %v1224, %v1226
        %v1228 = vadd.f32 %v1224, %v1227
        %vm1229 = vweird.f32 %v1223
        %vm1230 = vweird.f32 %v1224
        %vm1231 = vmor %vm1229, %vm1230
        %v1232 = vsel %vm1231, %v1224, %v1228
        %v1233 = vand.u32 2147483647, %v1223
        %vm1234 = vcmp.eq.f32.partialorder %v1233, 8.507059e+37
        %v1235 = vand.u32 %v1223, 2147483648
        %v1236 = vor.u32 1.1754944e-38, %v1235
        %v1237 = vsel %vm1234, %v1236, %v1232
        %v1238 = vmul.f32 %v1220, %v1237
        %v1239 = vadd.s32 %v589, 448
        %v1240 = vxor.u32 %v1239, 1
        %v1241 = vshrl.u32 %v1240, 16
        %v1242 = vxor.u32 %v1240, %v1241
        %v1243 = vmul.u32 %v1242, 2146121005
        %v1244 = vshrl.u32 %v1243, 15
        %v1245 = vxor.u32 %v1243, %v1244
        %v1246 = vmul.u32 %v1245, 2221713035
        %v1247 = vshrl.u32 %v1246, 16
        %v1248 = vxor.u32 %v1246, %v1247
        %v1249 = vand.u32 %v1248, 16777215
        %vm1250 = vcmp.ge.s32.totalorder %v1249, 6710886
        %v1251 = vmul.f32 %v1238, 1.6666666
        %v1252 = vsel %vm1250, %v1251, 0.0
        %v1253 = vpack.c.bf16 %v1252, %v1252
        %1254 = vrot.lane.b32.xlu0 %v743, 72
        %v1255 = vpop.permute.xlu0 %1254
        %v1257 = vsel %vm597, %v1253, 0
        %v1260 = vsel %vm660, %v1255, 0
        %1262 = vmatpush.bf16.msra.mxu0 0
        %1263 = vmatpush.bf16.msra.mxu0 0
        %1264 = vmatpush.bf16.msra.mxu0 0
        %1265 = vmatpush.bf16.msra.mxu0 0
        %1266 = vmatpush.bf16.msra.mxu0 0
        %1267 = vmatpush.bf16.msra.mxu0 0
        %1268 = vmatpush.bf16.msra.mxu0 0
        %1269 = vmatpush.bf16.msra.mxu0 %v1260
        %1270 = vmatmul.bf16.gmra.mxu0 %v1257
        %v1271 = vpop.f32.mrf.mxu0
        %v1272 = vadd.f32 0.0, %v1271
        %v1273 = vpop.f32.mrf.mxu0
        %1274 = vdwg.mxu0
        %1276 = vrot.lane.b32.xlu0 %v762, 8
        %v1277 = vpop.permute.xlu0 %1276
        %1280 = vrot.lane.b32.xlu0 %v847, 16
        %v1281 = vpop.permute.xlu0 %1280
        %1284 = vrot.lane.b32.xlu0 %v932, 24
        %v1285 = vpop.permute.xlu0 %1284
        %1288 = vrot.lane.b32.xlu0 %v1017, 32
        %v1289 = vpop.permute.xlu0 %1288
        %1292 = vrot.lane.b32.xlu0 %v1102, 40
        %v1293 = vpop.permute.xlu0 %1292
        %1296 = vrot.lane.b32.xlu0 %v1187, 48
        %v1297 = vpop.permute.xlu0 %1296
        %1300 = vrot.lane.b32.xlu0 %v1272, 56
        %v1301 = vpop.permute.xlu0 %1300
        %v1303 = vsel %vm597, %v674, %v1277
        %vm1304 = vcmask 130048
        %v1305 = vsel %vm1304, %v1303, %v1281
        %vm1306 = vcmask 195584
        %v1307 = vsel %vm1306, %v1305, %v1285
        %vm1308 = vcmask 261120
        %v1309 = vsel %vm1308, %v1307, %v1289
        %vm1310 = vcmask 326656
        %v1311 = vsel %vm1310, %v1309, %v1293
        %vm1312 = vcmask 392192
        %v1313 = vsel %vm1312, %v1311, %v1297
        %vm1314 = vcmask 457728
        %v1315 = vsel %vm1314, %v1313, %v1301
        %s1316 = smul.u32 %s28, 8
        %v1317 = vstv %s1316
        %v1318 = vadd.s32 %v1317, %v580
        %v1319 = vmul.u32 %v1318, 64
        %v1320 = vadd.s32 %v1319, %v582
        %v1321 = vpack.c.bf16 %v1315, %v1315
        %v1322 = vld [vmem:[%s4] sm:$0xf]
        %v1323 = vld [vmem:[%s4 + $0x4] sm:$0xf]
        %v1324 = vld [vmem:[%s4 + $0x8] sm:$0xf]
        %v1325 = vld [vmem:[%s4 + $0xc] sm:$0xf]
        %v1326 = vld [vmem:[%s4 + $0x10] sm:$0xf]
        %v1327 = vld [vmem:[%s4 + $0x14] sm:$0xf]
        %v1328 = vld [vmem:[%s4 + $0x18] sm:$0xf]
        %v1329 = vld [vmem:[%s4 + $0x1c] sm:$0xf]
        %v1330 = vld [vmem:[%s5] sm:$0x1]
        %v1332 = vperm.slane %v1330, 0
        %v1342 = vunpack.c.l.b16 %v1322
        %v1343 = vunpack.c.l.b16 %v1323
        %v1344 = vunpack.c.l.b16 %v1324
        %v1345 = vunpack.c.l.b16 %v1325
        %v1346 = vunpack.c.l.b16 %v1326
        %v1347 = vunpack.c.l.b16 %v1327
        %v1348 = vunpack.c.l.b16 %v1328
        %v1349 = vunpack.c.l.b16 %v1329
        %v1350 = vpack.c.b16 %v1343, %v1342
        %v1351 = vpack.c.b16 %v1345, %v1344
        %v1352 = vpack.c.b16 %v1347, %v1346
        %v1353 = vpack.c.b16 %v1349, %v1348
        %v1359 = vsel %vm467, %v1321, 0
        %1361 = vmatpush.bf16.msra.mxu0 0
        %1362 = vmatpush.bf16.msra.mxu0 0
        %1363 = vmatpush.bf16.msra.mxu0 0
        %1364 = vmatpush.bf16.msra.mxu0 0
        %1365 = vmatpush.bf16.msra.mxu0 %v1353
        %1366 = vmatpush.bf16.msra.mxu0 %v1352
        %1367 = vmatpush.bf16.msra.mxu0 %v1351
        %1368 = vmatpush.bf16.msra.mxu0 %v1350
        %1369 = vmatmul.bf16.gmra.mxu0 %v1359
        %v1370 = vpop.f32.mrf.mxu0
        %v1371 = vadd.f32 %v1332, %v1370
        %v1372 = vpop.f32.mrf.mxu0
        %1373 = vdwg.mxu0
        %v1374 = vxor.u32 %v1320, 2
        %v1375 = vshrl.u32 %v1374, 16
        %v1376 = vxor.u32 %v1374, %v1375
        %v1377 = vmul.u32 %v1376, 2146121005
        %v1378 = vshrl.u32 %v1377, 15
        %v1379 = vxor.u32 %v1377, %v1378
        %v1380 = vmul.u32 %v1379, 2221713035
        %v1381 = vshrl.u32 %v1380, 16
        %v1382 = vxor.u32 %v1380, %v1381
        %v1383 = vand.u32 %v1382, 16777215
        %vm1384 = vcmp.ge.s32.totalorder %v1383, 6710886
        %v1385 = vmul.f32 %v1371, 1.6666666
        %v1386 = vsel %vm1384, %v1385, 0.0
        %v1387 = vadd.f32 %v464, %v1386
        %v1388 = vld [vmem:[%s6] sm:$0x1]
        %v1389 = vld [vmem:[%s7] sm:$0x1]
        %v1390 = vsel %vm467, %v1387, 0.0
        %1391 = vadd.xlane.f32.xlu0 %v1390
        %v1392 = vpop.xlane.xlu0 %1391
        %v1393 = vmul.f32 %v1387, %v1387
        %v1394 = vsel %vm467, %v1393, 0.0
        %1395 = vadd.xlane.f32.xlu0 %v1394
        %v1396 = vpop.xlane.xlu0 %1395
        %v1397 = vmul.f32 %v1392, 0.015625
        %v1398 = vmul.f32 %v1396, 0.015625
        %v1399 = vmul.f32 %v1397, %v1397
        %v1400 = vsub.f32 %v1398, %v1399
        %v1401 = vmax.f32 %v1400, 0.0
        %v1402 = vsub.f32 %v1387, %v1397
        %v1403 = vadd.f32 %v1401, 1e-05
        %v1404 = vrsqrt.pop %v1403
        %v1405 = vmul.f32 %v1404, %v1403
        %v1406 = vmul.f32 %v1405, %v1404
        %v1407 = vmul.f32 0.5, %v1406
        %v1408 = vsub.f32 1.5, %v1407
        %v1409 = vmul.f32 %v1404, %v1408
        %vm1410 = vweird.f32 %v1403
        %vm1411 = vweird.f32 %v1404
        %vm1412 = vmor %vm1410, %vm1411
        %v1413 = vsel %vm1412, %v1404, %v1409
        %v1414 = vmul.f32 %v1402, %v1413
        %v1416 = vperm.slane %v1388, 0
        %v1418 = vmul.f32 %v1414, %v1416
        %v1420 = vperm.slane %v1389, 0
        %v1422 = vadd.f32 %v1418, %v1420
        %v1423 = vpack.c.bf16 %v1422, %v1422
        %v1424 = vld [vmem:[%s8] sm:$0xff]
        %v1425 = vld [vmem:[%s8 + $0x8] sm:$0xff]
        %v1426 = vld [vmem:[%s8 + $0x10] sm:$0xff]
        %v1427 = vld [vmem:[%s8 + $0x18] sm:$0xff]
        %v1428 = vld [vmem:[%s8 + $0x20] sm:$0xff]
        %v1429 = vld [vmem:[%s8 + $0x28] sm:$0xff]
        %v1430 = vld [vmem:[%s8 + $0x30] sm:$0xff]
        %v1431 = vld [vmem:[%s8 + $0x38] sm:$0xff]
        %v1432 = vld [vmem:[%s9] sm:$0x3]
        %v1434 = vperm.slane %v1432, 0
        %v1435 = vperm.slane %v1432, 1
        %v1446 = vunpack.c.l.b16 %v1424
        %v1447 = vunpack.c.h.b16 %v1424
        %v1448 = vunpack.c.l.b16 %v1425
        %v1449 = vunpack.c.h.b16 %v1425
        %v1450 = vunpack.c.l.b16 %v1426
        %v1451 = vunpack.c.h.b16 %v1426
        %v1452 = vunpack.c.l.b16 %v1427
        %v1453 = vunpack.c.h.b16 %v1427
        %v1454 = vunpack.c.l.b16 %v1428
        %v1455 = vunpack.c.h.b16 %v1428
        %v1456 = vunpack.c.l.b16 %v1429
        %v1457 = vunpack.c.h.b16 %v1429
        %v1458 = vunpack.c.l.b16 %v1430
        %v1459 = vunpack.c.h.b16 %v1430
        %v1460 = vunpack.c.l.b16 %v1431
        %v1461 = vunpack.c.h.b16 %v1431
        %v1462 = vpack.c.b16 %v1448, %v1446
        %v1463 = vpack.c.b16 %v1449, %v1447
        %v1464 = vpack.c.b16 %v1452, %v1450
        %v1465 = vpack.c.b16 %v1453, %v1451
        %v1466 = vpack.c.b16 %v1456, %v1454
        %v1467 = vpack.c.b16 %v1457, %v1455
        %v1468 = vpack.c.b16 %v1460, %v1458
        %v1469 = vpack.c.b16 %v1461, %v1459
        %v1479 = vsel %vm467, %v1423, 0
        %1481 = vmatpush.bf16.msra.mxu0 0
        %1482 = vmatpush.bf16.msra.mxu0 0
        %1483 = vmatpush.bf16.msra.mxu0 0
        %1484 = vmatpush.bf16.msra.mxu0 0
        %1485 = vmatpush.bf16.msra.mxu0 %v1468
        %1486 = vmatpush.bf16.msra.mxu0 %v1466
        %1487 = vmatpush.bf16.msra.mxu0 %v1464
        %1488 = vmatpush.bf16.msra.mxu0 %v1462
        %1489 = vmatmul.bf16.gmra.mxu0 %v1479
        %v1490 = vpop.f32.mrf.mxu0
        %v1491 = vadd.f32 %v1434, %v1490
        %v1492 = vpop.f32.mrf.mxu0
        %1493 = vdwg.mxu0
        %1494 = vmatpush.bf16.msra.mxu0 0
        %1495 = vmatpush.bf16.msra.mxu0 0
        %1496 = vmatpush.bf16.msra.mxu0 0
        %1497 = vmatpush.bf16.msra.mxu0 0
        %1498 = vmatpush.bf16.msra.mxu0 %v1469
        %1499 = vmatpush.bf16.msra.mxu0 %v1467
        %1500 = vmatpush.bf16.msra.mxu0 %v1465
        %1501 = vmatpush.bf16.msra.mxu0 %v1463
        %1502 = vmatmul.bf16.gmra.mxu0 %v1479
        %v1503 = vpop.f32.mrf.mxu0
        %v1504 = vadd.f32 %v1435, %v1503
        %v1505 = vpop.f32.mrf.mxu0
        %1506 = vdwg.mxu0
        %v1507 = vld [vmem:[%s10] sm:$0x3]
        %v1508 = vld [vmem:[%s11] sm:$0x3]
        %v1509 = vadd.f32 %v1491, %v1504
        %1510 = vadd.xlane.f32.xlu0 %v1509
        %v1511 = vpop.xlane.xlu0 %1510
        %v1512 = vmul.f32 %v1491, %v1491
        %v1513 = vmul.f32 %v1504, %v1504
        %v1514 = vadd.f32 %v1512, %v1513
        %1515 = vadd.xlane.f32.xlu0 %v1514
        %v1516 = vpop.xlane.xlu0 %1515
        %v1517 = vmul.f32 %v1511, 0.00390625
        %v1518 = vmul.f32 %v1516, 0.00390625
        %v1519 = vmul.f32 %v1517, %v1517
        %v1520 = vsub.f32 %v1518, %v1519
        %v1521 = vmax.f32 %v1520, 0.0
        %v1522 = vsub.f32 %v1491, %v1517
        %v1523 = vsub.f32 %v1504, %v1517
        %v1524 = vadd.f32 %v1521, 1e-05
        %v1525 = vrsqrt.pop %v1524
        %v1526 = vmul.f32 %v1525, %v1524
        %v1527 = vmul.f32 %v1526, %v1525
        %v1528 = vmul.f32 0.5, %v1527
        %v1529 = vsub.f32 1.5, %v1528
        %v1530 = vmul.f32 %v1525, %v1529
        %vm1531 = vweird.f32 %v1524
        %vm1532 = vweird.f32 %v1525
        %vm1533 = vmor %vm1531, %vm1532
        %v1534 = vsel %vm1533, %v1525, %v1530
        %v1535 = vmul.f32 %v1522, %v1534
        %v1536 = vmul.f32 %v1523, %v1534
        %v1538 = vperm.slane %v1507, 0
        %v1539 = vperm.slane %v1507, 1
        %v1542 = vmul.f32 %v1535, %v1538
        %v1543 = vmul.f32 %v1536, %v1539
        %v1545 = vperm.slane %v1508, 0
        %v1546 = vperm.slane %v1508, 1
        %v1549 = vadd.f32 %v1542, %v1545
        %v1550 = vadd.f32 %v1543, %v1546
        %v1551 = vmax.f32 %v1549, 0.0
        %v1552 = vmax.f32 %v1550, 0.0
        %v1553 = vpack.c.bf16 %v1551, %v1551
        %v1554 = vpack.c.bf16 %v1552, %v1552
        %v1555 = vld [vmem:[%s12] sm:$0xf]
        %v1556 = vld [vmem:[%s12 + $0x4] sm:$0xf]
        %v1557 = vld [vmem:[%s12 + $0x8] sm:$0xf]
        %v1558 = vld [vmem:[%s12 + $0xc] sm:$0xf]
        %v1559 = vld [vmem:[%s12 + $0x10] sm:$0xf]
        %v1560 = vld [vmem:[%s12 + $0x14] sm:$0xf]
        %v1561 = vld [vmem:[%s12 + $0x18] sm:$0xf]
        %v1562 = vld [vmem:[%s12 + $0x1c] sm:$0xf]
        %v1563 = vld [vmem:[%s12 + $0x20] sm:$0xf]
        %v1564 = vld [vmem:[%s12 + $0x24] sm:$0xf]
        %v1565 = vld [vmem:[%s12 + $0x28] sm:$0xf]
        %v1566 = vld [vmem:[%s12 + $0x2c] sm:$0xf]
        %v1567 = vld [vmem:[%s12 + $0x30] sm:$0xf]
        %v1568 = vld [vmem:[%s12 + $0x34] sm:$0xf]
        %v1569 = vld [vmem:[%s12 + $0x38] sm:$0xf]
        %v1570 = vld [vmem:[%s12 + $0x3c] sm:$0xf]
        %v1571 = vld [vmem:[%s12 + $0x40] sm:$0xf]
        %v1572 = vld [vmem:[%s12 + $0x44] sm:$0xf]
        %v1573 = vld [vmem:[%s12 + $0x48] sm:$0xf]
        %v1574 = vld [vmem:[%s12 + $0x4c] sm:$0xf]
        %v1575 = vld [vmem:[%s12 + $0x50] sm:$0xf]
        %v1576 = vld [vmem:[%s12 + $0x54] sm:$0xf]
        %v1577 = vld [vmem:[%s12 + $0x58] sm:$0xf]
        %v1578 = vld [vmem:[%s12 + $0x5c] sm:$0xf]
        %v1579 = vld [vmem:[%s12 + $0x60] sm:$0xf]
        %v1580 = vld [vmem:[%s12 + $0x64] sm:$0xf]
        %v1581 = vld [vmem:[%s12 + $0x68] sm:$0xf]
        %v1582 = vld [vmem:[%s12 + $0x6c] sm:$0xf]
        %v1583 = vld [vmem:[%s12 + $0x70] sm:$0xf]
        %v1584 = vld [vmem:[%s12 + $0x74] sm:$0xf]
        %v1585 = vld [vmem:[%s12 + $0x78] sm:$0xf]
        %v1586 = vld [vmem:[%s12 + $0x7c] sm:$0xf]
        %v1587 = vld [vmem:[%s13] sm:$0x1]
        %v1589 = vperm.slane %v1587, 0
        %v1623 = vunpack.c.l.b16 %v1555
        %v1624 = vunpack.c.l.b16 %v1556
        %v1625 = vunpack.c.l.b16 %v1557
        %v1626 = vunpack.c.l.b16 %v1558
        %v1627 = vunpack.c.l.b16 %v1559
        %v1628 = vunpack.c.l.b16 %v1560
        %v1629 = vunpack.c.l.b16 %v1561
        %v1630 = vunpack.c.l.b16 %v1562
        %v1631 = vunpack.c.l.b16 %v1563
        %v1632 = vunpack.c.l.b16 %v1564
        %v1633 = vunpack.c.l.b16 %v1565
        %v1634 = vunpack.c.l.b16 %v1566
        %v1635 = vunpack.c.l.b16 %v1567
        %v1636 = vunpack.c.l.b16 %v1568
        %v1637 = vunpack.c.l.b16 %v1569
        %v1638 = vunpack.c.l.b16 %v1570
        %v1639 = vunpack.c.l.b16 %v1571
        %v1640 = vunpack.c.l.b16 %v1572
        %v1641 = vunpack.c.l.b16 %v1573
        %v1642 = vunpack.c.l.b16 %v1574
        %v1643 = vunpack.c.l.b16 %v1575
        %v1644 = vunpack.c.l.b16 %v1576
        %v1645 = vunpack.c.l.b16 %v1577
        %v1646 = vunpack.c.l.b16 %v1578
        %v1647 = vunpack.c.l.b16 %v1579
        %v1648 = vunpack.c.l.b16 %v1580
        %v1649 = vunpack.c.l.b16 %v1581
        %v1650 = vunpack.c.l.b16 %v1582
        %v1651 = vunpack.c.l.b16 %v1583
        %v1652 = vunpack.c.l.b16 %v1584
        %v1653 = vunpack.c.l.b16 %v1585
        %v1654 = vunpack.c.l.b16 %v1586
        %v1655 = vpack.c.b16 %v1624, %v1623
        %v1656 = vpack.c.b16 %v1626, %v1625
        %v1657 = vpack.c.b16 %v1628, %v1627
        %v1658 = vpack.c.b16 %v1630, %v1629
        %v1659 = vpack.c.b16 %v1632, %v1631
        %v1660 = vpack.c.b16 %v1634, %v1633
        %v1661 = vpack.c.b16 %v1636, %v1635
        %v1662 = vpack.c.b16 %v1638, %v1637
        %v1663 = vpack.c.b16 %v1640, %v1639
        %v1664 = vpack.c.b16 %v1642, %v1641
        %v1665 = vpack.c.b16 %v1644, %v1643
        %v1666 = vpack.c.b16 %v1646, %v1645
        %v1667 = vpack.c.b16 %v1648, %v1647
        %v1668 = vpack.c.b16 %v1650, %v1649
        %v1669 = vpack.c.b16 %v1652, %v1651
        %v1670 = vpack.c.b16 %v1654, %v1653
        %1687 = vmatpush.bf16.msra.mxu0 %v1662
        %1688 = vmatpush.bf16.msra.mxu0 %v1661
        %1689 = vmatpush.bf16.msra.mxu0 %v1660
        %1690 = vmatpush.bf16.msra.mxu0 %v1659
        %1691 = vmatpush.bf16.msra.mxu0 %v1658
        %1692 = vmatpush.bf16.msra.mxu0 %v1657
        %1693 = vmatpush.bf16.msra.mxu0 %v1656
        %1694 = vmatpush.bf16.msra.mxu0 %v1655
        %1695 = vmatmul.bf16.gmra.mxu0 %v1553
        %v1696 = vpop.f32.mrf.mxu0
        %v1697 = vadd.f32 %v1589, %v1696
        %v1698 = vpop.f32.mrf.mxu0
        %1699 = vdwg.mxu0
        %1700 = vmatpush.bf16.msra.mxu0 %v1670
        %1701 = vmatpush.bf16.msra.mxu0 %v1669
        %1702 = vmatpush.bf16.msra.mxu0 %v1668
        %1703 = vmatpush.bf16.msra.mxu0 %v1667
        %1704 = vmatpush.bf16.msra.mxu0 %v1666
        %1705 = vmatpush.bf16.msra.mxu0 %v1665
        %1706 = vmatpush.bf16.msra.mxu0 %v1664
        %1707 = vmatpush.bf16.msra.mxu0 %v1663
        %1708 = vmatmul.bf16.gmra.mxu0 %v1554
        %v1709 = vpop.f32.mrf.mxu0
        %v1710 = vadd.f32 %v1697, %v1709
        %v1711 = vpop.f32.mrf.mxu0
        %1712 = vdwg.mxu0
        %v1713 = vxor.u32 %v1320, 3
        %v1714 = vshrl.u32 %v1713, 16
        %v1715 = vxor.u32 %v1713, %v1714
        %v1716 = vmul.u32 %v1715, 2146121005
        %v1717 = vshrl.u32 %v1716, 15
        %v1718 = vxor.u32 %v1716, %v1717
        %v1719 = vmul.u32 %v1718, 2221713035
        %v1720 = vshrl.u32 %v1719, 16
        %v1721 = vxor.u32 %v1719, %v1720
        %v1722 = vand.u32 %v1721, 16777215
        %vm1723 = vcmp.ge.s32.totalorder %v1722, 6710886
        %v1724 = vmul.f32 %v1710, 1.6666666
        %v1725 = vsel %vm1723, %v1724, 0.0
        %v1726 = vadd.f32 %v1387, %v1725
        %1727 = vst.msk [vmem:[%s458] sm:$0xff] %vm467, %v1726
        %s1728 = sand.u32 %s335, 1
        %s1729 = scalar_lea.sflag [#allocation3], %s1728
        %s1730 = sand.u32 %s335, 1
        %s1731 = smul.addr %s1730, 8
        %s1732 = scalar_lea.vmem [#allocation2], %s1731
        // Predicated region
        $region77: #{block_forward.1} parent=75 // pred_check
          %p1733 = pneg %p345
        $region78: #{block_forward.1} parent=75 // pred_check_branch
          %1735 = sbr.rel (%p1733) target = $region80
        $region79: #{block_forward.1} parent=75 // pred_region
          %1737 = vsyncadd %s1729, 0
          %s1738 = smul.addr %s28, 8
          %s1739 = scalar_lea.hbm %s14, %s1738
          %s1741 = sshll.u32 %s1732, 4
          %s1742 = int_to_ptr.vmem [resolvable:$true] %s1741
          %s1743 = sshll.u32 %s1739, 4
          %s1744 = int_to_ptr.hbm [resolvable:$true] %s1743
          %1746 = dma.vmem_to_hbm [thread:$0]  %s1742, 128, %s1744, %s1729
        $region80: #{block_forward.1} parent=75 // pred_fallthru
          _
      $region76: #{block_forward.1} parent=5 // pred_fallthru
        _
      %p1747 = scmp.le.s32.totalorder 2, %s23
      // Predicated region
      $region81: #{block_forward.1} parent=5 // pred_check
        %p1748 = pneg %p1747
      $region82: #{block_forward.1} parent=5 // pred_check_branch
        %1750 = sbr.rel (%p1748) target = $region84
      $region83: #{block_forward.1} parent=5 // pred_region
        %s1751 = ssub.s32 %s23, 2
        // Predicated region
        $region85: #{block_forward.1} parent=83 // pred_check
          %p1752 = pneg %p351
        $region86: #{block_forward.1} parent=83 // pred_check_branch
          %1754 = sbr.rel (%p1752) target = $region88
        $region87: #{block_forward.1} parent=83 // pred_region
          %s1755 = sand.u32 %s336, 1
          %s1756 = scalar_lea.sflag [#allocation3], %s1755
          %s1757 = sand.u32 %s336, 1
          %s1758 = smul.addr %s1757, 8
          %s1759 = scalar_lea.vmem [#allocation2], %s1758
          %1761 = dma.done %s1756, 128
        $region88: #{block_forward.1} parent=83 // pred_fallthru
          _
      $region84: #{block_forward.1} parent=5 // pred_fallthru
        _
    $region6: #{block_forward.1} parent=1 // loop_footer
      %s27 = sadd.s32 1, %s23
    $region7: #{block_forward.1} parent=1 // loop_footer_branch
      %22 = sbr.rel target = $region3
    $region8: #{block_forward.1} parent=1 // loop_exit
      _
    %1762 = vsyncpa [#allocation3], 1
    %s1763 = scalar_lea.sflag [#allocation3], 1
    %1764 = vsyncpa %s1763, 1

</llo_original>
